<compile_context>
chip_gen: v7x
topology: tpu7x:2x2x1
jax: 0.10.0
libtpu: 0.0.40
codegen_flags: <defaults>
</compile_context>

<pallas_src>
import functools
import math

import jax
import jax.numpy as jnp
from jax import lax
from jax.experimental import pallas as pl
from jax.experimental.pallas import tpu as pltpu


def _layer_norm(x, gamma, beta, eps=1e-5):
    mean = jnp.mean(x, axis=-1, keepdims=True)
    var = jnp.mean((x - mean) ** 2, axis=-1, keepdims=True)
    return (x - mean) * lax.rsqrt(var + eps) * gamma + beta


def encoder_block_kernel(
    x_ref,
    ln1_g_ref, ln1_b_ref,
    wq_ref, bq_ref, wk_ref, bk_ref, wv_ref, bv_ref, wo_ref, bo_ref,
    ln2_g_ref, ln2_b_ref,
    w1_ref, b1_ref, w2_ref, b2_ref,
    out_ref,
    *, num_heads, head_dim, window_size):
    x = x_ref[0]                                   # [S, D] float32
    S = x.shape[0]
    W = window_size

    # ---------------- LayerNorm 1 (f32) ----------------
    xn = _layer_norm(x, ln1_g_ref[...], ln1_b_ref[...])
    xn_b = xn.astype(jnp.bfloat16)

    # ---------------- Q / K / V projections (bf16 MXU, f32 accum) ----------------
    q = jnp.dot(xn_b, wq_ref[...], preferred_element_type=jnp.float32) + bq_ref[...]
    k = jnp.dot(xn_b, wk_ref[...], preferred_element_type=jnp.float32) + bk_ref[...]
    v = jnp.dot(xn_b, wv_ref[...], preferred_element_type=jnp.float32) + bv_ref[...]

    # Fold 1/sqrt(head_dim) into q once instead of scaling every S*S score matrix.
    q = q * (1.0 / math.sqrt(head_dim))
    q_b = q.astype(jnp.bfloat16)
    k_b = k.astype(jnp.bfloat16)
    v_b = v.astype(jnp.bfloat16)

    # ---------------- windowed attention ----------------
    # Reference: query i attends over padded K positions [i, 2*i+W); real key m is
    # attended iff (i-W+1) <= m <= 2*i; additionally max(W-1-i, 0) zero-padded rows
    # (score 0, value 0) enter the softmax denominator only.
    row_i = lax.broadcasted_iota(jnp.int32, (S, S), 0)    # query index i
    col_m = lax.broadcasted_iota(jnp.int32, (S, S), 1)    # key index m
    real_mask = (col_m >= row_i - (W - 1)) & (col_m <= 2 * row_i)
    i_vec = lax.broadcasted_iota(jnp.int32, (S, 1), 0)
    n_pad = jnp.maximum((W - 1) - i_vec, 0).astype(jnp.float32)   # [S, 1]
    has_pad = n_pad > 0.0
    dn = (((1,), (1,)), ((), ()))   # contract last dims (q @ k^T)

    head_outs = []
    for h in range(num_heads):
        sl = slice(h * head_dim, (h + 1) * head_dim)
        s = lax.dot_general(q_b[:, sl], k_b[:, sl], dn,
                            preferred_element_type=jnp.float32)
        s = jnp.where(real_mask, s, -jnp.inf)
        m_real = jnp.max(s, axis=-1, keepdims=True)                     # [S, 1]
        m = jnp.where(has_pad, jnp.maximum(m_real, 0.0), m_real)        # include pad score 0
        p = jnp.where(real_mask, jnp.exp(s - m), 0.0)                   # f32 softmax numerators
        # Pad rows contribute n_pad * exp(0 - m).  Clamp exponent to <= 0 so rows with
        # n_pad == 0 never compute exp of a large positive value (0 * inf = NaN guard).
        pad_term = n_pad * jnp.exp(jnp.minimum(-m, 0.0))
        denom = jnp.sum(p, axis=-1, keepdims=True) + pad_term
        # Un-normalized P @ V (bf16 MXU), then one EUP reciprocal rescale.
        o_un = jnp.dot(p.astype(jnp.bfloat16), v_b[:, sl],
                       preferred_element_type=jnp.float32)
        head_outs.append(o_un * pl.reciprocal(denom, approx=True))
        # TODO(synk): attention dropout omitted (eval-mode identity).

    # Lane-dense [S, D] context slab (no masked per-head stores, no scratch).
    attn_ctx = jnp.concatenate(head_outs, axis=-1)
    attn = jnp.dot(attn_ctx.astype(jnp.bfloat16), wo_ref[...],
                   preferred_element_type=jnp.float32) + bo_ref[...]
    h1 = attn + x                                   # residual 1

    # ---------------- LayerNorm 2 + FeedForward ----------------
    hn = _layer_norm(h1, ln2_g_ref[...], ln2_b_ref[...])
    ff = jnp.dot(hn.astype(jnp.bfloat16), w1_ref[...],
                 preferred_element_type=jnp.float32) + b1_ref[...]
    ff = jnp.maximum(ff, 0.0)                       # ReLU
    # TODO(synk): FFN dropout omitted (eval-mode identity).
    ff = jnp.dot(ff.astype(jnp.bfloat16), w2_ref[...],
                 preferred_element_type=jnp.float32) + b2_ref[...]
    out_ref[0] = (ff + h1).astype(out_ref.dtype)    # residual 2


_WEIGHT_ORDER = ["ln1_g", "ln1_b",
                 "wq", "bq", "wk", "bk", "wv", "bv", "wo", "bo",
                 "ln2_g", "ln2_b",
                 "w1", "b1", "w2", "b2"]
# Matmul weights go to the MXU -> store them in bf16; biases / LN params stay f32.
_BF16_WEIGHTS = {"wq", "wk", "wv", "wo", "w1", "w2"}


def encoder_block(x, params, *, num_heads, window_size):
    B, S, D = x.shape
    F = 4 * D
    head_dim = D // num_heads
    kernel = functools.partial(encoder_block_kernel, num_heads=num_heads,
                               head_dim=head_dim, window_size=window_size)

    weights = []
    for name in _WEIGHT_ORDER:
        w = params[name]
        if name in _BF16_WEIGHTS:
            w = w.astype(jnp.bfloat16)
        weights.append(w)

    def full_spec(shape):
        return pl.BlockSpec(shape, lambda b, _n=len(shape): (0,) * _n)

    w_specs = [full_spec(w.shape) for w in weights]

    # Advisory cost estimate for the XLA scheduler around the fused call.
    flops = B * (24 * S * D * D + 4 * S * S * D)
    transcendentals = B * (num_heads * S * S + num_heads * S + 2 * S)
    w_bytes = sum(int(w.size) * w.dtype.itemsize for w in weights)
    bytes_accessed = 2 * B * S * D * 4 + w_bytes
    cost = pl.CostEstimate(flops=int(flops),
                           transcendentals=int(transcendentals),
                           bytes_accessed=int(bytes_accessed))

    return pl.pallas_call(
        kernel,
        out_shape=jax.ShapeDtypeStruct((B, S, D), x.dtype),
        grid_spec=pltpu.PrefetchScalarGridSpec(
            num_scalar_prefetch=0,
            grid=(B,),
            in_specs=[pl.BlockSpec((1, S, D), lambda b: (b, 0, 0))] + w_specs,
            out_specs=pl.BlockSpec((1, S, D), lambda b: (b, 0, 0)),
        ),
        compiler_params=pltpu.CompilerParams(
            dimension_semantics=("parallel",),
            vmem_limit_bytes=64 * 1024 * 1024),
        cost_estimate=cost,
    )(x, *weights)


def init_params(key, dim_model):
    D = dim_model
    F = 4 * dim_model
    ks = jax.random.split(key, 16)

    def w(k, fan_in, fan_out):
        return (jax.random.normal(k, (fan_in, fan_out), jnp.float32)
                / math.sqrt(fan_in))

    def b(k, n):
        return jax.random.normal(k, (1, n), jnp.float32) * 0.02

    return {
        "ln1_g": jnp.ones((1, D), jnp.float32),
        "ln1_b": jnp.zeros((1, D), jnp.float32),
        "wq": w(ks[0], D, D), "bq": b(ks[1], D),
        "wk": w(ks[2], D, D), "bk": b(ks[3], D),
        "wv": w(ks[4], D, D), "bv": b(ks[5], D),
        "wo": w(ks[6], D, D), "bo": b(ks[7], D),
        "ln2_g": jnp.ones((1, D), jnp.float32),
        "ln2_b": jnp.zeros((1, D), jnp.float32),
        "w1": w(ks[8], D, F), "b1": b(ks[9], F),
        "w2": w(ks[10], F, D), "b2": b(ks[11], D),
    }


def reference_forward(x, params, num_heads, window_size):
    """Literal pure-JAX (f32) translation of the PyTorch forward (eval mode)."""
    def ln(t, g, b_, eps=1e-5):
        mu = t.mean(-1, keepdims=True)
        var = ((t - mu) ** 2).mean(-1, keepdims=True)
        return (t - mu) / jnp.sqrt(var + eps) * g + b_

    B, S, D = x.shape
    H, W = num_heads, window_size
    Dh = D // H
    xn = ln(x, params["ln1_g"], params["ln1_b"])
    q = xn @ params["wq"] + params["bq"]
    k = xn @ params["wk"] + params["bk"]
    v = xn @ params["wv"] + params["bv"]

    def split(t):
        return t.reshape(B, S, H, Dh).transpose(0, 2, 1, 3)

    Q, K, V = split(q), split(k), split(v)
    Kp = jnp.pad(K, ((0, 0), (0, 0), (W - 1, 0), (0, 0)))
    Vp = jnp.pad(V, ((0, 0), (0, 0), (W - 1, 0), (0, 0)))
    outs = []
    for i in range(S):
        window_end = i + W
        qi = Q[:, :, i:i + 1, :]
        ki = Kp[:, :, i:i + window_end, :]
        vi = Vp[:, :, i:i + window_end, :]
        sc = jnp.einsum("bhqd,bhkd->bhqk", qi, ki) / math.sqrt(Dh)
        wgt = jax.nn.softmax(sc, axis=-1)
        outs.append(jnp.einsum("bhqk,bhkd->bhqd", wgt, vi))
    attn = jnp.concatenate(outs, axis=2).transpose(0, 2, 1, 3).reshape(B, S, D)
    attn = attn @ params["wo"] + params["bo"]
    h1 = attn + x
    hn = ln(h1, params["ln2_g"], params["ln2_b"])
    ff = jnp.maximum(hn @ params["w1"] + params["b1"], 0.0)
    ff = ff @ params["w2"] + params["b2"]
    return ff + h1


if __name__ == "__main__":
    batch, seq, dim_model = 2, 8, 32
    num_heads, window_size = 4, 3

    root = jax.random.PRNGKey(0)
    kx, kp = jax.random.split(root)
    x = jax.random.normal(kx, (batch, seq, dim_model), jnp.float32)
    params = init_params(kp, dim_model)

    out = encoder_block(x, params, num_heads=num_heads, window_size=window_size)
    out = jax.block_until_ready(out)

    ref = reference_forward(x, params, num_heads, window_size)
    assert out.shape == (batch, seq, dim_model)
    # bf16 MXU inputs (f32 accumulation) -> slightly looser tolerance than pure-f32.
    assert jnp.allclose(out, ref, atol=2e-2, rtol=2e-2)
    print("KERNEL_OK")
</pallas_src>

<mosaic_0001>
module attributes {stable_mosaic.version = 11 : i64} {
  func.func @encoder_block_kernel(%arg0: i32, %arg1: memref<1x8x32xf32, #tpu.memory_space<vmem>>, %arg2: memref<1x32xf32, #tpu.memory_space<vmem>>, %arg3: memref<1x32xf32, #tpu.memory_space<vmem>>, %arg4: memref<32x32xbf16, #tpu.memory_space<vmem>>, %arg5: memref<1x32xf32, #tpu.memory_space<vmem>>, %arg6: memref<32x32xbf16, #tpu.memory_space<vmem>>, %arg7: memref<1x32xf32, #tpu.memory_space<vmem>>, %arg8: memref<32x32xbf16, #tpu.memory_space<vmem>>, %arg9: memref<1x32xf32, #tpu.memory_space<vmem>>, %arg10: memref<32x32xbf16, #tpu.memory_space<vmem>>, %arg11: memref<1x32xf32, #tpu.memory_space<vmem>>, %arg12: memref<1x32xf32, #tpu.memory_space<vmem>>, %arg13: memref<1x32xf32, #tpu.memory_space<vmem>>, %arg14: memref<32x128xbf16, #tpu.memory_space<vmem>>, %arg15: memref<1x128xf32, #tpu.memory_space<vmem>>, %arg16: memref<128x32xbf16, #tpu.memory_space<vmem>>, %arg17: memref<1x32xf32, #tpu.memory_space<vmem>>, %arg18: memref<1x8x32xf32, #tpu.memory_space<vmem>>) attributes {dimension_semantics = [#tpu.dimension_semantics<parallel>], iteration_bounds = array<i64: 2>, scalar_prefetch = 0 : i64, scratch_operands = 0 : i64, tpu.core_type = #tpu.core_type<tc>, window_params = [{transform_indices = @transform_0, window_bounds = array<i64: 1, 8, 32>}, {pipeline_mode = #tpu.pipeline_mode<synchronous>, transform_indices = @transform_1, window_bounds = array<i64: 1, 32>}, {pipeline_mode = #tpu.pipeline_mode<synchronous>, transform_indices = @transform_2, window_bounds = array<i64: 1, 32>}, {pipeline_mode = #tpu.pipeline_mode<synchronous>, transform_indices = @transform_3, window_bounds = array<i64: 32, 32>}, {pipeline_mode = #tpu.pipeline_mode<synchronous>, transform_indices = @transform_4, window_bounds = array<i64: 1, 32>}, {pipeline_mode = #tpu.pipeline_mode<synchronous>, transform_indices = @transform_5, window_bounds = array<i64: 32, 32>}, {pipeline_mode = #tpu.pipeline_mode<synchronous>, transform_indices = @transform_6, window_bounds = array<i64: 1, 32>}, {pipeline_mode = #tpu.pipeline_mode<synchronous>, transform_indices = @transform_7, window_bounds = array<i64: 32, 32>}, {pipeline_mode = #tpu.pipeline_mode<synchronous>, transform_indices = @transform_8, window_bounds = array<i64: 1, 32>}, {pipeline_mode = #tpu.pipeline_mode<synchronous>, transform_indices = @transform_9, window_bounds = array<i64: 32, 32>}, {pipeline_mode = #tpu.pipeline_mode<synchronous>, transform_indices = @transform_10, window_bounds = array<i64: 1, 32>}, {pipeline_mode = #tpu.pipeline_mode<synchronous>, transform_indices = @transform_11, window_bounds = array<i64: 1, 32>}, {pipeline_mode = #tpu.pipeline_mode<synchronous>, transform_indices = @transform_12, window_bounds = array<i64: 1, 32>}, {pipeline_mode = #tpu.pipeline_mode<synchronous>, transform_indices = @transform_13, window_bounds = array<i64: 32, 128>}, {pipeline_mode = #tpu.pipeline_mode<synchronous>, transform_indices = @transform_14, window_bounds = array<i64: 1, 128>}, {pipeline_mode = #tpu.pipeline_mode<synchronous>, transform_indices = @transform_15, window_bounds = array<i64: 128, 32>}, {pipeline_mode = #tpu.pipeline_mode<synchronous>, transform_indices = @transform_16, window_bounds = array<i64: 1, 32>}, {transform_indices = @transform_17, window_bounds = array<i64: 1, 8, 32>}]} {
    %c0 = arith.constant 0 : index
    %c0_0 = arith.constant 0 : index
    %c0_1 = arith.constant 0 : index
    %0 = vector.load %arg1[%c0, %c0_0, %c0_1] : memref<1x8x32xf32, #tpu.memory_space<vmem>>, vector<1x8x32xf32>
    %1 = vector.shape_cast %0 : vector<1x8x32xf32> to vector<8x32xf32>
    %c0_2 = arith.constant 0 : index
    %c0_3 = arith.constant 0 : index
    %2 = vector.load %arg2[%c0_2, %c0_3] : memref<1x32xf32, #tpu.memory_space<vmem>>, vector<1x32xf32>
    %c0_4 = arith.constant 0 : index
    %c0_5 = arith.constant 0 : index
    %3 = vector.load %arg3[%c0_4, %c0_5] : memref<1x32xf32, #tpu.memory_space<vmem>>, vector<1x32xf32>
    %cst = arith.constant dense<0.000000e+00> : vector<8xf32>
    %4 = vector.multi_reduction <add>, %1, %cst [1] : vector<8x32xf32> to vector<8xf32>
    %5 = vector.shape_cast %4 : vector<8xf32> to vector<8x1xf32>
    %cst_6 = arith.constant 3.200000e+01 : f32
    %6 = vector.broadcast %cst_6 : f32 to vector<8x1xf32>
    %7 = arith.divf %5, %6 : vector<8x1xf32>
    %8 = vector.broadcast %7 : vector<8x1xf32> to vector<8x32xf32>
    %9 = arith.subf %1, %8 : vector<8x32xf32>
    %10 = arith.mulf %9, %9 : vector<8x32xf32>
    %cst_7 = arith.constant dense<0.000000e+00> : vector<8xf32>
    %11 = vector.multi_reduction <add>, %10, %cst_7 [1] : vector<8x32xf32> to vector<8xf32>
    %12 = vector.shape_cast %11 : vector<8xf32> to vector<8x1xf32>
    %cst_8 = arith.constant 3.200000e+01 : f32
    %13 = vector.broadcast %cst_8 : f32 to vector<8x1xf32>
    %14 = arith.divf %12, %13 : vector<8x1xf32>
    %15 = vector.broadcast %7 : vector<8x1xf32> to vector<8x32xf32>
    %16 = arith.subf %1, %15 : vector<8x32xf32>
    %cst_9 = arith.constant 9.99999974E-6 : f32
    %17 = vector.broadcast %cst_9 : f32 to vector<8x1xf32>
    %18 = arith.addf %14, %17 : vector<8x1xf32>
    %19 = math.rsqrt %18 : vector<8x1xf32>
    %20 = vector.broadcast %19 : vector<8x1xf32> to vector<8x32xf32>
    %21 = arith.mulf %16, %20 : vector<8x32xf32>
    %22 = vector.broadcast %2 : vector<1x32xf32> to vector<8x32xf32>
    %23 = arith.mulf %21, %22 : vector<8x32xf32>
    %24 = vector.broadcast %3 : vector<1x32xf32> to vector<8x32xf32>
    %25 = arith.addf %23, %24 : vector<8x32xf32>
    %26 = arith.truncf %25 : vector<8x32xf32> to vector<8x32xbf16>
    %c0_10 = arith.constant 0 : index
    %c0_11 = arith.constant 0 : index
    %27 = vector.load %arg4[%c0_10, %c0_11] : memref<32x32xbf16, #tpu.memory_space<vmem>>, vector<32x32xbf16>
    %cst_12 = arith.constant dense<0.000000e+00> : vector<8x32xf32>
    %28 = tpu.matmul %26, %27, %cst_12 {dimension_numbers = #tpu.dot_dimension_numbers<[1], [0], [0], [1], [0, 0, 1, 1], [], []>} : vector<8x32xbf16>, vector<32x32xbf16>, vector<8x32xf32> -> vector<8x32xf32>
    %c0_13 = arith.constant 0 : index
    %c0_14 = arith.constant 0 : index
    %29 = vector.load %arg5[%c0_13, %c0_14] : memref<1x32xf32, #tpu.memory_space<vmem>>, vector<1x32xf32>
    %30 = vector.broadcast %29 : vector<1x32xf32> to vector<8x32xf32>
    %31 = arith.addf %28, %30 : vector<8x32xf32>
    %c0_15 = arith.constant 0 : index
    %c0_16 = arith.constant 0 : index
    %32 = vector.load %arg6[%c0_15, %c0_16] : memref<32x32xbf16, #tpu.memory_space<vmem>>, vector<32x32xbf16>
    %cst_17 = arith.constant dense<0.000000e+00> : vector<8x32xf32>
    %33 = tpu.matmul %26, %32, %cst_17 {dimension_numbers = #tpu.dot_dimension_numbers<[1], [0], [0], [1], [0, 0, 1, 1], [], []>} : vector<8x32xbf16>, vector<32x32xbf16>, vector<8x32xf32> -> vector<8x32xf32>
    %c0_18 = arith.constant 0 : index
    %c0_19 = arith.constant 0 : index
    %34 = vector.load %arg7[%c0_18, %c0_19] : memref<1x32xf32, #tpu.memory_space<vmem>>, vector<1x32xf32>
    %35 = vector.broadcast %34 : vector<1x32xf32> to vector<8x32xf32>
    %36 = arith.addf %33, %35 : vector<8x32xf32>
    %c0_20 = arith.constant 0 : index
    %c0_21 = arith.constant 0 : index
    %37 = vector.load %arg8[%c0_20, %c0_21] : memref<32x32xbf16, #tpu.memory_space<vmem>>, vector<32x32xbf16>
    %cst_22 = arith.constant dense<0.000000e+00> : vector<8x32xf32>
    %38 = tpu.matmul %26, %37, %cst_22 {dimension_numbers = #tpu.dot_dimension_numbers<[1], [0], [0], [1], [0, 0, 1, 1], [], []>} : vector<8x32xbf16>, vector<32x32xbf16>, vector<8x32xf32> -> vector<8x32xf32>
    %c0_23 = arith.constant 0 : index
    %c0_24 = arith.constant 0 : index
    %39 = vector.load %arg9[%c0_23, %c0_24] : memref<1x32xf32, #tpu.memory_space<vmem>>, vector<1x32xf32>
    %40 = vector.broadcast %39 : vector<1x32xf32> to vector<8x32xf32>
    %41 = arith.addf %38, %40 : vector<8x32xf32>
    %cst_25 = arith.constant 0.353553385 : f32
    %42 = vector.broadcast %cst_25 : f32 to vector<8x32xf32>
    %43 = arith.mulf %31, %42 : vector<8x32xf32>
    %44 = arith.truncf %43 : vector<8x32xf32> to vector<8x32xbf16>
    %45 = arith.truncf %36 : vector<8x32xf32> to vector<8x32xbf16>
    %46 = arith.truncf %41 : vector<8x32xf32> to vector<8x32xbf16>
    %47 = tpu.iota {dimensions = array<i32: 0>} : vector<8x8xi32>
    %48 = tpu.iota {dimensions = array<i32: 1>} : vector<8x8xi32>
    %c2_i32 = arith.constant 2 : i32
    %49 = vector.broadcast %c2_i32 : i32 to vector<8x8xi32>
    %50 = arith.subi %47, %49 : vector<8x8xi32>
    %51 = arith.cmpi sge, %48, %50 : vector<8x8xi32>
    %c2_i32_26 = arith.constant 2 : i32
    %52 = vector.broadcast %c2_i32_26 : i32 to vector<8x8xi32>
    %53 = arith.muli %52, %47 : vector<8x8xi32>
    %54 = arith.cmpi sle, %48, %53 : vector<8x8xi32>
    %55 = arith.andi %51, %54 : vector<8x8xi1>
    %56 = tpu.iota {dimensions = array<i32: 0>} : vector<8x1xi32>
    %c2_i32_27 = arith.constant 2 : i32
    %57 = vector.broadcast %c2_i32_27 : i32 to vector<8x1xi32>
    %58 = arith.subi %57, %56 : vector<8x1xi32>
    %c0_i32 = arith.constant 0 : i32
    %59 = vector.broadcast %c0_i32 : i32 to vector<8x1xi32>
    %60 = arith.maxsi %58, %59 : vector<8x1xi32>
    %61 = arith.sitofp %60 : vector<8x1xi32> to vector<8x1xf32>
    %cst_28 = arith.constant 0.000000e+00 : f32
    %62 = vector.broadcast %cst_28 : f32 to vector<8x1xf32>
    %63 = arith.cmpf ogt, %61, %62 : vector<8x1xf32>
    %64 = vector.extract_strided_slice %44 {offsets = [0, 0], sizes = [8, 8], strides = [1, 1]} : vector<8x32xbf16> to vector<8x8xbf16>
    %65 = vector.extract_strided_slice %45 {offsets = [0, 0], sizes = [8, 8], strides = [1, 1]} : vector<8x32xbf16> to vector<8x8xbf16>
    %cst_29 = arith.constant dense<0.000000e+00> : vector<8x8xf32>
    %66 = tpu.matmul %64, %65, %cst_29 {dimension_numbers = #tpu.dot_dimension_numbers<[1], [1], [0], [0], [0, 0, 1, 0], [], []>} : vector<8x8xbf16>, vector<8x8xbf16>, vector<8x8xf32> -> vector<8x8xf32>
    %cst_30 = arith.constant 0xFF800000 : f32
    %67 = vector.broadcast %cst_30 : f32 to vector<8x8xf32>
    %68 = arith.select %55, %66, %67 : vector<8x8xi1>, vector<8x8xf32>
    %cst_31 = arith.constant dense<0xFF800000> : vector<8xf32>
    %69 = vector.multi_reduction <maximumf>, %68, %cst_31 [1] : vector<8x8xf32> to vector<8xf32>
    %70 = vector.shape_cast %69 : vector<8xf32> to vector<8x1xf32>
    %cst_32 = arith.constant 0.000000e+00 : f32
    %71 = vector.broadcast %cst_32 : f32 to vector<8x1xf32>
    %72 = arith.maximumf %70, %71 : vector<8x1xf32>
    %73 = arith.select %63, %72, %70 : vector<8x1xi1>, vector<8x1xf32>
    %74 = vector.broadcast %73 : vector<8x1xf32> to vector<8x8xf32>
    %75 = arith.subf %68, %74 : vector<8x8xf32>
    %76 = math.exp %75 : vector<8x8xf32>
    %cst_33 = arith.constant 0.000000e+00 : f32
    %77 = vector.broadcast %cst_33 : f32 to vector<8x8xf32>
    %78 = arith.select %55, %76, %77 : vector<8x8xi1>, vector<8x8xf32>
    %cst_34 = arith.constant 0.000000e+00 : f32
    %79 = vector.broadcast %cst_34 : f32 to vector<8x1xf32>
    %80 = arith.subf %79, %73 : vector<8x1xf32>
    %cst_35 = arith.constant 0.000000e+00 : f32
    %81 = vector.broadcast %cst_35 : f32 to vector<8x1xf32>
    %82 = arith.minimumf %80, %81 : vector<8x1xf32>
    %83 = math.exp %82 : vector<8x1xf32>
    %84 = arith.mulf %61, %83 : vector<8x1xf32>
    %cst_36 = arith.constant dense<0.000000e+00> : vector<8xf32>
    %85 = vector.multi_reduction <add>, %78, %cst_36 [1] : vector<8x8xf32> to vector<8xf32>
    %86 = vector.shape_cast %85 : vector<8xf32> to vector<8x1xf32>
    %87 = arith.addf %86, %84 : vector<8x1xf32>
    %88 = arith.truncf %78 : vector<8x8xf32> to vector<8x8xbf16>
    %89 = vector.extract_strided_slice %46 {offsets = [0, 0], sizes = [8, 8], strides = [1, 1]} : vector<8x32xbf16> to vector<8x8xbf16>
    %cst_37 = arith.constant dense<0.000000e+00> : vector<8x8xf32>
    %90 = tpu.matmul %88, %89, %cst_37 {dimension_numbers = #tpu.dot_dimension_numbers<[1], [0], [0], [1], [0, 0, 1, 1], [], []>} : vector<8x8xbf16>, vector<8x8xbf16>, vector<8x8xf32> -> vector<8x8xf32>
    %91 = tpu.reciprocal %87 {approx = true} : vector<8x1xf32> -> vector<8x1xf32>
    %92 = vector.broadcast %91 : vector<8x1xf32> to vector<8x8xf32>
    %93 = arith.mulf %90, %92 : vector<8x8xf32>
    %94 = vector.extract_strided_slice %44 {offsets = [0, 8], sizes = [8, 8], strides = [1, 1]} : vector<8x32xbf16> to vector<8x8xbf16>
    %95 = vector.extract_strided_slice %45 {offsets = [0, 8], sizes = [8, 8], strides = [1, 1]} : vector<8x32xbf16> to vector<8x8xbf16>
    %cst_38 = arith.constant dense<0.000000e+00> : vector<8x8xf32>
    %96 = tpu.matmul %94, %95, %cst_38 {dimension_numbers = #tpu.dot_dimension_numbers<[1], [1], [0], [0], [0, 0, 1, 0], [], []>} : vector<8x8xbf16>, vector<8x8xbf16>, vector<8x8xf32> -> vector<8x8xf32>
    %cst_39 = arith.constant 0xFF800000 : f32
    %97 = vector.broadcast %cst_39 : f32 to vector<8x8xf32>
    %98 = arith.select %55, %96, %97 : vector<8x8xi1>, vector<8x8xf32>
    %cst_40 = arith.constant dense<0xFF800000> : vector<8xf32>
    %99 = vector.multi_reduction <maximumf>, %98, %cst_40 [1] : vector<8x8xf32> to vector<8xf32>
    %100 = vector.shape_cast %99 : vector<8xf32> to vector<8x1xf32>
    %cst_41 = arith.constant 0.000000e+00 : f32
    %101 = vector.broadcast %cst_41 : f32 to vector<8x1xf32>
    %102 = arith.maximumf %100, %101 : vector<8x1xf32>
    %103 = arith.select %63, %102, %100 : vector<8x1xi1>, vector<8x1xf32>
    %104 = vector.broadcast %103 : vector<8x1xf32> to vector<8x8xf32>
    %105 = arith.subf %98, %104 : vector<8x8xf32>
    %106 = math.exp %105 : vector<8x8xf32>
    %cst_42 = arith.constant 0.000000e+00 : f32
    %107 = vector.broadcast %cst_42 : f32 to vector<8x8xf32>
    %108 = arith.select %55, %106, %107 : vector<8x8xi1>, vector<8x8xf32>
    %cst_43 = arith.constant 0.000000e+00 : f32
    %109 = vector.broadcast %cst_43 : f32 to vector<8x1xf32>
    %110 = arith.subf %109, %103 : vector<8x1xf32>
    %cst_44 = arith.constant 0.000000e+00 : f32
    %111 = vector.broadcast %cst_44 : f32 to vector<8x1xf32>
    %112 = arith.minimumf %110, %111 : vector<8x1xf32>
    %113 = math.exp %112 : vector<8x1xf32>
    %114 = arith.mulf %61, %113 : vector<8x1xf32>
    %cst_45 = arith.constant dense<0.000000e+00> : vector<8xf32>
    %115 = vector.multi_reduction <add>, %108, %cst_45 [1] : vector<8x8xf32> to vector<8xf32>
    %116 = vector.shape_cast %115 : vector<8xf32> to vector<8x1xf32>
    %117 = arith.addf %116, %114 : vector<8x1xf32>
    %118 = arith.truncf %108 : vector<8x8xf32> to vector<8x8xbf16>
    %119 = vector.extract_strided_slice %46 {offsets = [0, 8], sizes = [8, 8], strides = [1, 1]} : vector<8x32xbf16> to vector<8x8xbf16>
    %cst_46 = arith.constant dense<0.000000e+00> : vector<8x8xf32>
    %120 = tpu.matmul %118, %119, %cst_46 {dimension_numbers = #tpu.dot_dimension_numbers<[1], [0], [0], [1], [0, 0, 1, 1], [], []>} : vector<8x8xbf16>, vector<8x8xbf16>, vector<8x8xf32> -> vector<8x8xf32>
    %121 = tpu.reciprocal %117 {approx = true} : vector<8x1xf32> -> vector<8x1xf32>
    %122 = vector.broadcast %121 : vector<8x1xf32> to vector<8x8xf32>
    %123 = arith.mulf %120, %122 : vector<8x8xf32>
    %124 = vector.extract_strided_slice %44 {offsets = [0, 16], sizes = [8, 8], strides = [1, 1]} : vector<8x32xbf16> to vector<8x8xbf16>
    %125 = vector.extract_strided_slice %45 {offsets = [0, 16], sizes = [8, 8], strides = [1, 1]} : vector<8x32xbf16> to vector<8x8xbf16>
    %cst_47 = arith.constant dense<0.000000e+00> : vector<8x8xf32>
    %126 = tpu.matmul %124, %125, %cst_47 {dimension_numbers = #tpu.dot_dimension_numbers<[1], [1], [0], [0], [0, 0, 1, 0], [], []>} : vector<8x8xbf16>, vector<8x8xbf16>, vector<8x8xf32> -> vector<8x8xf32>
    %cst_48 = arith.constant 0xFF800000 : f32
    %127 = vector.broadcast %cst_48 : f32 to vector<8x8xf32>
    %128 = arith.select %55, %126, %127 : vector<8x8xi1>, vector<8x8xf32>
    %cst_49 = arith.constant dense<0xFF800000> : vector<8xf32>
    %129 = vector.multi_reduction <maximumf>, %128, %cst_49 [1] : vector<8x8xf32> to vector<8xf32>
    %130 = vector.shape_cast %129 : vector<8xf32> to vector<8x1xf32>
    %cst_50 = arith.constant 0.000000e+00 : f32
    %131 = vector.broadcast %cst_50 : f32 to vector<8x1xf32>
    %132 = arith.maximumf %130, %131 : vector<8x1xf32>
    %133 = arith.select %63, %132, %130 : vector<8x1xi1>, vector<8x1xf32>
    %134 = vector.broadcast %133 : vector<8x1xf32> to vector<8x8xf32>
    %135 = arith.subf %128, %134 : vector<8x8xf32>
    %136 = math.exp %135 : vector<8x8xf32>
    %cst_51 = arith.constant 0.000000e+00 : f32
    %137 = vector.broadcast %cst_51 : f32 to vector<8x8xf32>
    %138 = arith.select %55, %136, %137 : vector<8x8xi1>, vector<8x8xf32>
    %cst_52 = arith.constant 0.000000e+00 : f32
    %139 = vector.broadcast %cst_52 : f32 to vector<8x1xf32>
    %140 = arith.subf %139, %133 : vector<8x1xf32>
    %cst_53 = arith.constant 0.000000e+00 : f32
    %141 = vector.broadcast %cst_53 : f32 to vector<8x1xf32>
    %142 = arith.minimumf %140, %141 : vector<8x1xf32>
    %143 = math.exp %142 : vector<8x1xf32>
    %144 = arith.mulf %61, %143 : vector<8x1xf32>
    %cst_54 = arith.constant dense<0.000000e+00> : vector<8xf32>
    %145 = vector.multi_reduction <add>, %138, %cst_54 [1] : vector<8x8xf32> to vector<8xf32>
    %146 = vector.shape_cast %145 : vector<8xf32> to vector<8x1xf32>
    %147 = arith.addf %146, %144 : vector<8x1xf32>
    %148 = arith.truncf %138 : vector<8x8xf32> to vector<8x8xbf16>
    %149 = vector.extract_strided_slice %46 {offsets = [0, 16], sizes = [8, 8], strides = [1, 1]} : vector<8x32xbf16> to vector<8x8xbf16>
    %cst_55 = arith.constant dense<0.000000e+00> : vector<8x8xf32>
    %150 = tpu.matmul %148, %149, %cst_55 {dimension_numbers = #tpu.dot_dimension_numbers<[1], [0], [0], [1], [0, 0, 1, 1], [], []>} : vector<8x8xbf16>, vector<8x8xbf16>, vector<8x8xf32> -> vector<8x8xf32>
    %151 = tpu.reciprocal %147 {approx = true} : vector<8x1xf32> -> vector<8x1xf32>
    %152 = vector.broadcast %151 : vector<8x1xf32> to vector<8x8xf32>
    %153 = arith.mulf %150, %152 : vector<8x8xf32>
    %154 = vector.extract_strided_slice %44 {offsets = [0, 24], sizes = [8, 8], strides = [1, 1]} : vector<8x32xbf16> to vector<8x8xbf16>
    %155 = vector.extract_strided_slice %45 {offsets = [0, 24], sizes = [8, 8], strides = [1, 1]} : vector<8x32xbf16> to vector<8x8xbf16>
    %cst_56 = arith.constant dense<0.000000e+00> : vector<8x8xf32>
    %156 = tpu.matmul %154, %155, %cst_56 {dimension_numbers = #tpu.dot_dimension_numbers<[1], [1], [0], [0], [0, 0, 1, 0], [], []>} : vector<8x8xbf16>, vector<8x8xbf16>, vector<8x8xf32> -> vector<8x8xf32>
    %cst_57 = arith.constant 0xFF800000 : f32
    %157 = vector.broadcast %cst_57 : f32 to vector<8x8xf32>
    %158 = arith.select %55, %156, %157 : vector<8x8xi1>, vector<8x8xf32>
    %cst_58 = arith.constant dense<0xFF800000> : vector<8xf32>
    %159 = vector.multi_reduction <maximumf>, %158, %cst_58 [1] : vector<8x8xf32> to vector<8xf32>
    %160 = vector.shape_cast %159 : vector<8xf32> to vector<8x1xf32>
    %cst_59 = arith.constant 0.000000e+00 : f32
    %161 = vector.broadcast %cst_59 : f32 to vector<8x1xf32>
    %162 = arith.maximumf %160, %161 : vector<8x1xf32>
    %163 = arith.select %63, %162, %160 : vector<8x1xi1>, vector<8x1xf32>
    %164 = vector.broadcast %163 : vector<8x1xf32> to vector<8x8xf32>
    %165 = arith.subf %158, %164 : vector<8x8xf32>
    %166 = math.exp %165 : vector<8x8xf32>
    %cst_60 = arith.constant 0.000000e+00 : f32
    %167 = vector.broadcast %cst_60 : f32 to vector<8x8xf32>
    %168 = arith.select %55, %166, %167 : vector<8x8xi1>, vector<8x8xf32>
    %cst_61 = arith.constant 0.000000e+00 : f32
    %169 = vector.broadcast %cst_61 : f32 to vector<8x1xf32>
    %170 = arith.subf %169, %163 : vector<8x1xf32>
    %cst_62 = arith.constant 0.000000e+00 : f32
    %171 = vector.broadcast %cst_62 : f32 to vector<8x1xf32>
    %172 = arith.minimumf %170, %171 : vector<8x1xf32>
    %173 = math.exp %172 : vector<8x1xf32>
    %174 = arith.mulf %61, %173 : vector<8x1xf32>
    %cst_63 = arith.constant dense<0.000000e+00> : vector<8xf32>
    %175 = vector.multi_reduction <add>, %168, %cst_63 [1] : vector<8x8xf32> to vector<8xf32>
    %176 = vector.shape_cast %175 : vector<8xf32> to vector<8x1xf32>
    %177 = arith.addf %176, %174 : vector<8x1xf32>
    %178 = arith.truncf %168 : vector<8x8xf32> to vector<8x8xbf16>
    %179 = vector.extract_strided_slice %46 {offsets = [0, 24], sizes = [8, 8], strides = [1, 1]} : vector<8x32xbf16> to vector<8x8xbf16>
    %cst_64 = arith.constant dense<0.000000e+00> : vector<8x8xf32>
    %180 = tpu.matmul %178, %179, %cst_64 {dimension_numbers = #tpu.dot_dimension_numbers<[1], [0], [0], [1], [0, 0, 1, 1], [], []>} : vector<8x8xbf16>, vector<8x8xbf16>, vector<8x8xf32> -> vector<8x8xf32>
    %181 = tpu.reciprocal %177 {approx = true} : vector<8x1xf32> -> vector<8x1xf32>
    %182 = vector.broadcast %181 : vector<8x1xf32> to vector<8x8xf32>
    %183 = arith.mulf %180, %182 : vector<8x8xf32>
    %184 = tpu.concatenate %93, %123, %153, %183 in 1 : vector<8x8xf32>, vector<8x8xf32>, vector<8x8xf32>, vector<8x8xf32> -> vector<8x32xf32>
    %185 = arith.truncf %184 : vector<8x32xf32> to vector<8x32xbf16>
    %c0_65 = arith.constant 0 : index
    %c0_66 = arith.constant 0 : index
    %186 = vector.load %arg10[%c0_65, %c0_66] : memref<32x32xbf16, #tpu.memory_space<vmem>>, vector<32x32xbf16>
    %cst_67 = arith.constant dense<0.000000e+00> : vector<8x32xf32>
    %187 = tpu.matmul %185, %186, %cst_67 {dimension_numbers = #tpu.dot_dimension_numbers<[1], [0], [0], [1], [0, 0, 1, 1], [], []>} : vector<8x32xbf16>, vector<32x32xbf16>, vector<8x32xf32> -> vector<8x32xf32>
    %c0_68 = arith.constant 0 : index
    %c0_69 = arith.constant 0 : index
    %188 = vector.load %arg11[%c0_68, %c0_69] : memref<1x32xf32, #tpu.memory_space<vmem>>, vector<1x32xf32>
    %189 = vector.broadcast %188 : vector<1x32xf32> to vector<8x32xf32>
    %190 = arith.addf %187, %189 : vector<8x32xf32>
    %191 = arith.addf %190, %1 : vector<8x32xf32>
    %c0_70 = arith.constant 0 : index
    %c0_71 = arith.constant 0 : index
    %192 = vector.load %arg12[%c0_70, %c0_71] : memref<1x32xf32, #tpu.memory_space<vmem>>, vector<1x32xf32>
    %c0_72 = arith.constant 0 : index
    %c0_73 = arith.constant 0 : index
    %193 = vector.load %arg13[%c0_72, %c0_73] : memref<1x32xf32, #tpu.memory_space<vmem>>, vector<1x32xf32>
    %cst_74 = arith.constant dense<0.000000e+00> : vector<8xf32>
    %194 = vector.multi_reduction <add>, %191, %cst_74 [1] : vector<8x32xf32> to vector<8xf32>
    %195 = vector.shape_cast %194 : vector<8xf32> to vector<8x1xf32>
    %cst_75 = arith.constant 3.200000e+01 : f32
    %196 = vector.broadcast %cst_75 : f32 to vector<8x1xf32>
    %197 = arith.divf %195, %196 : vector<8x1xf32>
    %198 = vector.broadcast %197 : vector<8x1xf32> to vector<8x32xf32>
    %199 = arith.subf %191, %198 : vector<8x32xf32>
    %200 = arith.mulf %199, %199 : vector<8x32xf32>
    %cst_76 = arith.constant dense<0.000000e+00> : vector<8xf32>
    %201 = vector.multi_reduction <add>, %200, %cst_76 [1] : vector<8x32xf32> to vector<8xf32>
    %202 = vector.shape_cast %201 : vector<8xf32> to vector<8x1xf32>
    %cst_77 = arith.constant 3.200000e+01 : f32
    %203 = vector.broadcast %cst_77 : f32 to vector<8x1xf32>
    %204 = arith.divf %202, %203 : vector<8x1xf32>
    %205 = vector.broadcast %197 : vector<8x1xf32> to vector<8x32xf32>
    %206 = arith.subf %191, %205 : vector<8x32xf32>
    %cst_78 = arith.constant 9.99999974E-6 : f32
    %207 = vector.broadcast %cst_78 : f32 to vector<8x1xf32>
    %208 = arith.addf %204, %207 : vector<8x1xf32>
    %209 = math.rsqrt %208 : vector<8x1xf32>
    %210 = vector.broadcast %209 : vector<8x1xf32> to vector<8x32xf32>
    %211 = arith.mulf %206, %210 : vector<8x32xf32>
    %212 = vector.broadcast %192 : vector<1x32xf32> to vector<8x32xf32>
    %213 = arith.mulf %211, %212 : vector<8x32xf32>
    %214 = vector.broadcast %193 : vector<1x32xf32> to vector<8x32xf32>
    %215 = arith.addf %213, %214 : vector<8x32xf32>
    %216 = arith.truncf %215 : vector<8x32xf32> to vector<8x32xbf16>
    %c0_79 = arith.constant 0 : index
    %c0_80 = arith.constant 0 : index
    %217 = vector.load %arg14[%c0_79, %c0_80] : memref<32x128xbf16, #tpu.memory_space<vmem>>, vector<32x128xbf16>
    %cst_81 = arith.constant dense<0.000000e+00> : vector<8x128xf32>
    %218 = tpu.matmul %216, %217, %cst_81 {dimension_numbers = #tpu.dot_dimension_numbers<[1], [0], [0], [1], [0, 0, 1, 1], [], []>} : vector<8x32xbf16>, vector<32x128xbf16>, vector<8x128xf32> -> vector<8x128xf32>
    %c0_82 = arith.constant 0 : index
    %c0_83 = arith.constant 0 : index
    %219 = vector.load %arg15[%c0_82, %c0_83] : memref<1x128xf32, #tpu.memory_space<vmem>>, vector<1x128xf32>
    %220 = vector.broadcast %219 : vector<1x128xf32> to vector<8x128xf32>
    %221 = arith.addf %218, %220 : vector<8x128xf32>
    %cst_84 = arith.constant 0.000000e+00 : f32
    %222 = vector.broadcast %cst_84 : f32 to vector<8x128xf32>
    %223 = arith.maximumf %221, %222 : vector<8x128xf32>
    %224 = arith.truncf %223 : vector<8x128xf32> to vector<8x128xbf16>
    %c0_85 = arith.constant 0 : index
    %c0_86 = arith.constant 0 : index
    %225 = vector.load %arg16[%c0_85, %c0_86] : memref<128x32xbf16, #tpu.memory_space<vmem>>, vector<128x32xbf16>
    %cst_87 = arith.constant dense<0.000000e+00> : vector<8x32xf32>
    %226 = tpu.matmul %224, %225, %cst_87 {dimension_numbers = #tpu.dot_dimension_numbers<[1], [0], [0], [1], [0, 0, 1, 1], [], []>} : vector<8x128xbf16>, vector<128x32xbf16>, vector<8x32xf32> -> vector<8x32xf32>
    %c0_88 = arith.constant 0 : index
    %c0_89 = arith.constant 0 : index
    %227 = vector.load %arg17[%c0_88, %c0_89] : memref<1x32xf32, #tpu.memory_space<vmem>>, vector<1x32xf32>
    %228 = vector.broadcast %227 : vector<1x32xf32> to vector<8x32xf32>
    %229 = arith.addf %226, %228 : vector<8x32xf32>
    %230 = arith.addf %229, %191 : vector<8x32xf32>
    %c0_90 = arith.constant 0 : index
    %c0_91 = arith.constant 0 : index
    %c0_92 = arith.constant 0 : index
    %231 = vector.load %arg18[%c0_90, %c0_91, %c0_92] : memref<1x8x32xf32, #tpu.memory_space<vmem>>, vector<1x8x32xf32>
    %232 = vector.shape_cast %231 : vector<1x8x32xf32> to vector<8x32xf32>
    %233 = vector.shape_cast %230 : vector<8x32xf32> to vector<1x8x32xf32>
    tpu.vector_store %arg18[%c0_90, %c0_91, %c0_92], %233 {strides = array<i32>} : memref<1x8x32xf32, #tpu.memory_space<vmem>>, vector<1x8x32xf32>,
    return
  }
  func.func @transform_0(%arg0: i32) -> (i32, i32, i32) {
    %c0_i32 = arith.constant 0 : i32
    %c0_i32_0 = arith.constant 0 : i32
    %c0_i32_1 = arith.constant 0 : i32
    return %arg0, %c0_i32, %c0_i32_0 : i32, i32, i32
  }
  func.func @transform_1(%arg0: i32) -> (i32, i32) {
    %c0_i32 = arith.constant 0 : i32
    %c0_i32_0 = arith.constant 0 : i32
    %c0_i32_1 = arith.constant 0 : i32
    return %c0_i32, %c0_i32_0 : i32, i32
  }
  func.func @transform_2(%arg0: i32) -> (i32, i32) {
    %c0_i32 = arith.constant 0 : i32
    %c0_i32_0 = arith.constant 0 : i32
    %c0_i32_1 = arith.constant 0 : i32
    return %c0_i32, %c0_i32_0 : i32, i32
  }
  func.func @transform_3(%arg0: i32) -> (i32, i32) {
    %c0_i32 = arith.constant 0 : i32
    %c0_i32_0 = arith.constant 0 : i32
    %c0_i32_1 = arith.constant 0 : i32
    return %c0_i32, %c0_i32_0 : i32, i32
  }
  func.func @transform_4(%arg0: i32) -> (i32, i32) {
    %c0_i32 = arith.constant 0 : i32
    %c0_i32_0 = arith.constant 0 : i32
    %c0_i32_1 = arith.constant 0 : i32
    return %c0_i32, %c0_i32_0 : i32, i32
  }
  func.func @transform_5(%arg0: i32) -> (i32, i32) {
    %c0_i32 = arith.constant 0 : i32
    %c0_i32_0 = arith.constant 0 : i32
    %c0_i32_1 = arith.constant 0 : i32
    return %c0_i32, %c0_i32_0 : i32, i32
  }
  func.func @transform_6(%arg0: i32) -> (i32, i32) {
    %c0_i32 = arith.constant 0 : i32
    %c0_i32_0 = arith.constant 0 : i32
    %c0_i32_1 = arith.constant 0 : i32
    return %c0_i32, %c0_i32_0 : i32, i32
  }
  func.func @transform_7(%arg0: i32) -> (i32, i32) {
    %c0_i32 = arith.constant 0 : i32
    %c0_i32_0 = arith.constant 0 : i32
    %c0_i32_1 = arith.constant 0 : i32
    return %c0_i32, %c0_i32_0 : i32, i32
  }
  func.func @transform_8(%arg0: i32) -> (i32, i32) {
    %c0_i32 = arith.constant 0 : i32
    %c0_i32_0 = arith.constant 0 : i32
    %c0_i32_1 = arith.constant 0 : i32
    return %c0_i32, %c0_i32_0 : i32, i32
  }
  func.func @transform_9(%arg0: i32) -> (i32, i32) {
    %c0_i32 = arith.constant 0 : i32
    %c0_i32_0 = arith.constant 0 : i32
    %c0_i32_1 = arith.constant 0 : i32
    return %c0_i32, %c0_i32_0 : i32, i32
  }
  func.func @transform_10(%arg0: i32) -> (i32, i32) {
    %c0_i32 = arith.constant 0 : i32
    %c0_i32_0 = arith.constant 0 : i32
    %c0_i32_1 = arith.constant 0 : i32
    return %c0_i32, %c0_i32_0 : i32, i32
  }
  func.func @transform_11(%arg0: i32) -> (i32, i32) {
    %c0_i32 = arith.constant 0 : i32
    %c0_i32_0 = arith.constant 0 : i32
    %c0_i32_1 = arith.constant 0 : i32
    return %c0_i32, %c0_i32_0 : i32, i32
  }
  func.func @transform_12(%arg0: i32) -> (i32, i32) {
    %c0_i32 = arith.constant 0 : i32
    %c0_i32_0 = arith.constant 0 : i32
    %c0_i32_1 = arith.constant 0 : i32
    return %c0_i32, %c0_i32_0 : i32, i32
  }
  func.func @transform_13(%arg0: i32) -> (i32, i32) {
    %c0_i32 = arith.constant 0 : i32
    %c0_i32_0 = arith.constant 0 : i32
    %c0_i32_1 = arith.constant 0 : i32
    return %c0_i32, %c0_i32_0 : i32, i32
  }
  func.func @transform_14(%arg0: i32) -> (i32, i32) {
    %c0_i32 = arith.constant 0 : i32
    %c0_i32_0 = arith.constant 0 : i32
    %c0_i32_1 = arith.constant 0 : i32
    return %c0_i32, %c0_i32_0 : i32, i32
  }
  func.func @transform_15(%arg0: i32) -> (i32, i32) {
    %c0_i32 = arith.constant 0 : i32
    %c0_i32_0 = arith.constant 0 : i32
    %c0_i32_1 = arith.constant 0 : i32
    return %c0_i32, %c0_i32_0 : i32, i32
  }
  func.func @transform_16(%arg0: i32) -> (i32, i32) {
    %c0_i32 = arith.constant 0 : i32
    %c0_i32_0 = arith.constant 0 : i32
    %c0_i32_1 = arith.constant 0 : i32
    return %c0_i32, %c0_i32_0 : i32, i32
  }
  func.func @transform_17(%arg0: i32) -> (i32, i32, i32) {
    %c0_i32 = arith.constant 0 : i32
    %c0_i32_0 = arith.constant 0 : i32
    %c0_i32_1 = arith.constant 0 : i32
    return %arg0, %c0_i32, %c0_i32_0 : i32, i32, i32
  }
}

</mosaic_0001>

<llo_original>
// kernel: tpu_custom_call.1
$region0: #{tpu_custom_call.1}
  #allocation0 [shape = 'u32[]', space=smem, size = 0x4, offset = 0x4, fixed_abs, tag = 'smem constant byte address 0x4 - core index']
  #allocation1 [shape = 'u32[144,128]{1,0:T(1,128)}', space=vmem, size = 0x12000, scoped, tag = 'internal scratch']
  %s0 = inlined_call_operand.hbm [shape: f32[2,8,32], index: 0, kind: input, shape index: {}]
  %s1 = inlined_call_operand.hbm [shape: f32[1,32], index: 1, kind: input, shape index: {}]
  %s2 = inlined_call_operand.hbm [shape: f32[1,32], index: 2, kind: input, shape index: {}]
  %s3 = inlined_call_operand.hbm [shape: bf16[32,32], index: 3, kind: input, shape index: {}]
  %s4 = inlined_call_operand.hbm [shape: f32[1,32], index: 4, kind: input, shape index: {}]
  %s5 = inlined_call_operand.hbm [shape: bf16[32,32], index: 5, kind: input, shape index: {}]
  %s6 = inlined_call_operand.hbm [shape: f32[1,32], index: 6, kind: input, shape index: {}]
  %s7 = inlined_call_operand.hbm [shape: bf16[32,32], index: 7, kind: input, shape index: {}]
  %s8 = inlined_call_operand.hbm [shape: f32[1,32], index: 8, kind: input, shape index: {}]
  %s9 = inlined_call_operand.hbm [shape: bf16[32,32], index: 9, kind: input, shape index: {}]
  %s10 = inlined_call_operand.hbm [shape: f32[1,32], index: 10, kind: input, shape index: {}]
  %s11 = inlined_call_operand.hbm [shape: f32[1,32], index: 11, kind: input, shape index: {}]
  %s12 = inlined_call_operand.hbm [shape: f32[1,32], index: 12, kind: input, shape index: {}]
  %s13 = inlined_call_operand.hbm [shape: bf16[32,128], index: 13, kind: input, shape index: {}]
  %s14 = inlined_call_operand.hbm [shape: f32[1,128], index: 14, kind: input, shape index: {}]
  %s15 = inlined_call_operand.hbm [shape: bf16[128,32], index: 15, kind: input, shape index: {}]
  %s16 = inlined_call_operand.hbm [shape: f32[1,32], index: 16, kind: input, shape index: {}]
  %s17 = inlined_call_operand.hbm [shape: f32[2,8,32], index: 17, kind: output, shape index: {}]
  %s18 = sld [smem:[#allocation0]]
  $region169: #{tpu_custom_call.1} parent=0
    _
  %s20 = ssub.s32 1, %s18
  %s21 = scalar_select 0, %s20, %s18
  $region1: #{tpu_custom_call.1} parent=0
    #allocation2 [shape = 'u8[8192]{0}', space=vmem, size = 0x2000, scoped, tag = 'input window, operand 0']
    #allocation3 [shape = 's32[2]{0}', space=sflag, size = 0x8, scoped, tag = 'scoped memory for tpu_custom_call.1']
    #allocation4 [shape = 's32[2]{0}', space=sflag, size = 0x8, scoped, tag = 'scoped memory for tpu_custom_call.1']
    #allocation5 [shape = 'u8[512]{0}', space=vmem, size = 0x400, scoped, tag = 'input window, operand 1, single buffered']
    #allocation6 [shape = 's32[1]{0}', space=sflag, size = 0x4, scoped, tag = 'scoped memory for tpu_custom_call.1']
    #allocation7 [shape = 'u8[512]{0}', space=vmem, size = 0x400, scoped, tag = 'input window, operand 2, single buffered']
    #allocation8 [shape = 'u8[8192]{0}', space=vmem, size = 0x2000, scoped, tag = 'input window, operand 3, single buffered']
    #allocation9 [shape = 's32[1]{0}', space=sflag, size = 0x4, scoped, tag = 'scoped memory for tpu_custom_call.1']
    #allocation10 [shape = 'u8[512]{0}', space=vmem, size = 0x400, scoped, tag = 'input window, operand 4, single buffered']
    #allocation11 [shape = 'u8[8192]{0}', space=vmem, size = 0x2000, scoped, tag = 'input window, operand 5, single buffered']
    #allocation12 [shape = 's32[1]{0}', space=sflag, size = 0x4, scoped, tag = 'scoped memory for tpu_custom_call.1']
    #allocation13 [shape = 'u8[512]{0}', space=vmem, size = 0x400, scoped, tag = 'input window, operand 6, single buffered']
    #allocation14 [shape = 'u8[8192]{0}', space=vmem, size = 0x2000, scoped, tag = 'input window, operand 7, single buffered']
    #allocation15 [shape = 's32[1]{0}', space=sflag, size = 0x4, scoped, tag = 'scoped memory for tpu_custom_call.1']
    #allocation16 [shape = 'u8[512]{0}', space=vmem, size = 0x400, scoped, tag = 'input window, operand 8, single buffered']
    #allocation17 [shape = 'u8[8192]{0}', space=vmem, size = 0x2000, scoped, tag = 'input window, operand 9, single buffered']
    #allocation18 [shape = 's32[1]{0}', space=sflag, size = 0x4, scoped, tag = 'scoped memory for tpu_custom_call.1']
    #allocation19 [shape = 'u8[512]{0}', space=vmem, size = 0x400, scoped, tag = 'input window, operand 10, single buffered']
    #allocation20 [shape = 'u8[512]{0}', space=vmem, size = 0x400, scoped, tag = 'input window, operand 11, single buffered']
    #allocation21 [shape = 's32[1]{0}', space=sflag, size = 0x4, scoped, tag = 'scoped memory for tpu_custom_call.1']
    #allocation22 [shape = 'u8[512]{0}', space=vmem, size = 0x400, scoped, tag = 'input window, operand 12, single buffered']
    #allocation23 [shape = 'u8[8192]{0}', space=vmem, size = 0x2000, scoped, tag = 'input window, operand 13, single buffered']
    #allocation24 [shape = 's32[1]{0}', space=sflag, size = 0x4, scoped, tag = 'scoped memory for tpu_custom_call.1']
    #allocation25 [shape = 'u8[512]{0}', space=vmem, size = 0x400, scoped, tag = 'input window, operand 14, single buffered']
    #allocation26 [shape = 'u8[32768]{0}', space=vmem, size = 0x8000, scoped, tag = 'input window, operand 15, single buffered']
    #allocation27 [shape = 's32[1]{0}', space=sflag, size = 0x4, scoped, tag = 'scoped memory for tpu_custom_call.1']
    #allocation28 [shape = 'u8[512]{0}', space=vmem, size = 0x400, scoped, tag = 'input window, operand 16, single buffered']
    #allocation29 [shape = 'u8[8192]{0}', space=vmem, size = 0x2000, scoped, tag = 'output window, operand 0']
    %22 = vsyncpa [#allocation3], 0
    %s23 = scalar_lea.sflag [#allocation3], 1
    %24 = vsyncpa %s23, 0
    %25 = vsyncpa [#allocation6], 0
    %26 = vsyncpa [#allocation9], 0
    %27 = vsyncpa [#allocation12], 0
    %28 = vsyncpa [#allocation15], 0
    %29 = vsyncpa [#allocation18], 0
    %30 = vsyncpa [#allocation21], 0
    %31 = vsyncpa [#allocation24], 0
    %32 = vsyncpa [#allocation27], 0
    %33 = vsyncpa [#allocation4], 0
    %s34 = scalar_lea.sflag [#allocation4], 1
    %35 = vsyncpa %s34, 0
    loop: start=0, step=1, limit=4
    $region2: #{tpu_custom_call.1} parent=1 // loop_pre_header
      _
    $region3: #{tpu_custom_call.1} parent=1 // loop_header
      %s37 = sphi 0, %s41
      %p38 = scmp.ge.s32.totalorder %s37, 4
      %s47 = sphi 0, %s49
      %s50 = sphi 0, %s47
      %s51 = sphi 0, %s50
      %s67 = sphi 0, %s51
      %s71 = sphi 0, %s71
      %s73 = sphi 0, %s71
      %s74 = sphi 0, %s73
      %s88 = sphi 0, %s74
      %s92 = sphi 0, %s92
      %s94 = sphi 0, %s92
      %s95 = sphi 0, %s94
      %s109 = sphi 0, %s95
      %s113 = sphi 0, %s113
      %s115 = sphi 0, %s113
      %s116 = sphi 0, %s115
      %s130 = sphi 0, %s116
      %s134 = sphi 0, %s134
      %s136 = sphi 0, %s134
      %s137 = sphi 0, %s136
      %s151 = sphi 0, %s137
      %s155 = sphi 0, %s155
      %s157 = sphi 0, %s155
      %s158 = sphi 0, %s157
      %s172 = sphi 0, %s158
      %s176 = sphi 0, %s176
      %s178 = sphi 0, %s176
      %s179 = sphi 0, %s178
      %s193 = sphi 0, %s179
      %s197 = sphi 0, %s197
      %s199 = sphi 0, %s197
      %s200 = sphi 0, %s199
      %s214 = sphi 0, %s200
      %s218 = sphi 0, %s218
      %s220 = sphi 0, %s218
      %s221 = sphi 0, %s220
      %s235 = sphi 0, %s221
      %s239 = sphi 0, %s239
      %s241 = sphi 0, %s239
      %s242 = sphi 0, %s241
      %s256 = sphi 0, %s242
      %s260 = sphi 0, %s260
      %s262 = sphi 0, %s260
      %s263 = sphi 0, %s262
      %s277 = sphi 0, %s263
      %s281 = sphi 0, %s281
      %s283 = sphi 0, %s281
      %s284 = sphi 0, %s283
      %s298 = sphi 0, %s284
      %s302 = sphi 0, %s302
      %s304 = sphi 0, %s302
      %s305 = sphi 0, %s304
      %s319 = sphi 0, %s305
      %s323 = sphi 0, %s323
      %s325 = sphi 0, %s323
      %s326 = sphi 0, %s325
      %s340 = sphi 0, %s326
      %s344 = sphi 0, %s344
      %s346 = sphi 0, %s344
      %s347 = sphi 0, %s346
      %s361 = sphi 0, %s347
      %s365 = sphi 0, %s365
      %s367 = sphi 0, %s365
      %s368 = sphi 0, %s367
      %s382 = sphi 0, %s368
      %s386 = sphi 0, %s386
      %s388 = sphi 0, %s386
      %s389 = sphi 0, %s388
      %s403 = sphi 0, %s389
      %s409 = sphi 0, %s411
      %s412 = sphi 0, %s409
      %s413 = sphi 0, %s412
      %s429 = sphi 0, %s413
    $region4: #{tpu_custom_call.1} parent=1 // loop_header_branch
      %40 = sbr.rel (%p38) target = $region8
    $region5: #{tpu_custom_call.1} parent=1 // loop_body
      %s42 = ssub.s32 %s37, 1
      %s43 = ssub.s32 %s37, 2
      %s44 = sadd.s32 %s37, 1
      %s45 = ssub.s32 %s37, %s44
      %p46 = scmp.eq.s32.totalorder %s45, 0
      %s48 = sadd.s32 %s47, 1
      %s49 = scalar_select %p46, %s47, %s48
      %p52 = pneg %p46
      %p53 = scmp.eq.s32.totalorder %s37, 1
      %p54 = por %p52, %p53
      %p55 = scmp.ne.s32.totalorder %s47, %s50
      %p56 = scmp.eq.s32.totalorder %s37, 0
      %p57 = por %p55, %p56
      %p58 = scmp.ne.s32.totalorder %s47, %s50
      %p59 = scmp.eq.s32.totalorder %s42, 1
      %p60 = por %p58, %p59
      %p61 = scmp.ne.s32.totalorder %s50, %s51
      %p62 = scmp.eq.s32.totalorder %s42, 0
      %p63 = por %p61, %p62
      %p64 = scmp.ne.s32.totalorder %s50, %s51
      %p65 = scmp.eq.s32.totalorder %s43, 1
      %p66 = por %p64, %p65
      %p68 = scmp.ne.s32.totalorder %s51, %s67
      %p69 = scmp.eq.s32.totalorder %s43, 0
      %p70 = por %p68, %p69
      %s72 = sadd.s32 %s71, 1
      %p75 = scmp.eq.s32.totalorder %s37, 1
      %p76 = scmp.ne.s32.totalorder %s71, %s73
      %p77 = scmp.eq.s32.totalorder %s37, 0
      %p78 = por %p76, %p77
      %p79 = scmp.ne.s32.totalorder %s71, %s73
      %p80 = scmp.eq.s32.totalorder %s42, 1
      %p81 = por %p79, %p80
      %p82 = scmp.ne.s32.totalorder %s73, %s74
      %p83 = scmp.eq.s32.totalorder %s42, 0
      %p84 = por %p82, %p83
      %p85 = scmp.ne.s32.totalorder %s73, %s74
      %p86 = scmp.eq.s32.totalorder %s43, 1
      %p87 = por %p85, %p86
      %p89 = scmp.ne.s32.totalorder %s74, %s88
      %p90 = scmp.eq.s32.totalorder %s43, 0
      %p91 = por %p89, %p90
      %s93 = sadd.s32 %s92, 1
      %p96 = scmp.eq.s32.totalorder %s37, 1
      %p97 = scmp.ne.s32.totalorder %s92, %s94
      %p98 = scmp.eq.s32.totalorder %s37, 0
      %p99 = por %p97, %p98
      %p100 = scmp.ne.s32.totalorder %s92, %s94
      %p101 = scmp.eq.s32.totalorder %s42, 1
      %p102 = por %p100, %p101
      %p103 = scmp.ne.s32.totalorder %s94, %s95
      %p104 = scmp.eq.s32.totalorder %s42, 0
      %p105 = por %p103, %p104
      %p106 = scmp.ne.s32.totalorder %s94, %s95
      %p107 = scmp.eq.s32.totalorder %s43, 1
      %p108 = por %p106, %p107
      %p110 = scmp.ne.s32.totalorder %s95, %s109
      %p111 = scmp.eq.s32.totalorder %s43, 0
      %p112 = por %p110, %p111
      %s114 = sadd.s32 %s113, 1
      %p117 = scmp.eq.s32.totalorder %s37, 1
      %p118 = scmp.ne.s32.totalorder %s113, %s115
      %p119 = scmp.eq.s32.totalorder %s37, 0
      %p120 = por %p118, %p119
      %p121 = scmp.ne.s32.totalorder %s113, %s115
      %p122 = scmp.eq.s32.totalorder %s42, 1
      %p123 = por %p121, %p122
      %p124 = scmp.ne.s32.totalorder %s115, %s116
      %p125 = scmp.eq.s32.totalorder %s42, 0
      %p126 = por %p124, %p125
      %p127 = scmp.ne.s32.totalorder %s115, %s116
      %p128 = scmp.eq.s32.totalorder %s43, 1
      %p129 = por %p127, %p128
      %p131 = scmp.ne.s32.totalorder %s116, %s130
      %p132 = scmp.eq.s32.totalorder %s43, 0
      %p133 = por %p131, %p132
      %s135 = sadd.s32 %s134, 1
      %p138 = scmp.eq.s32.totalorder %s37, 1
      %p139 = scmp.ne.s32.totalorder %s134, %s136
      %p140 = scmp.eq.s32.totalorder %s37, 0
      %p141 = por %p139, %p140
      %p142 = scmp.ne.s32.totalorder %s134, %s136
      %p143 = scmp.eq.s32.totalorder %s42, 1
      %p144 = por %p142, %p143
      %p145 = scmp.ne.s32.totalorder %s136, %s137
      %p146 = scmp.eq.s32.totalorder %s42, 0
      %p147 = por %p145, %p146
      %p148 = scmp.ne.s32.totalorder %s136, %s137
      %p149 = scmp.eq.s32.totalorder %s43, 1
      %p150 = por %p148, %p149
      %p152 = scmp.ne.s32.totalorder %s137, %s151
      %p153 = scmp.eq.s32.totalorder %s43, 0
      %p154 = por %p152, %p153
      %s156 = sadd.s32 %s155, 1
      %p159 = scmp.eq.s32.totalorder %s37, 1
      %p160 = scmp.ne.s32.totalorder %s155, %s157
      %p161 = scmp.eq.s32.totalorder %s37, 0
      %p162 = por %p160, %p161
      %p163 = scmp.ne.s32.totalorder %s155, %s157
      %p164 = scmp.eq.s32.totalorder %s42, 1
      %p165 = por %p163, %p164
      %p166 = scmp.ne.s32.totalorder %s157, %s158
      %p167 = scmp.eq.s32.totalorder %s42, 0
      %p168 = por %p166, %p167
      %p169 = scmp.ne.s32.totalorder %s157, %s158
      %p170 = scmp.eq.s32.totalorder %s43, 1
      %p171 = por %p169, %p170
      %p173 = scmp.ne.s32.totalorder %s158, %s172
      %p174 = scmp.eq.s32.totalorder %s43, 0
      %p175 = por %p173, %p174
      %s177 = sadd.s32 %s176, 1
      %p180 = scmp.eq.s32.totalorder %s37, 1
      %p181 = scmp.ne.s32.totalorder %s176, %s178
      %p182 = scmp.eq.s32.totalorder %s37, 0
      %p183 = por %p181, %p182
      %p184 = scmp.ne.s32.totalorder %s176, %s178
      %p185 = scmp.eq.s32.totalorder %s42, 1
      %p186 = por %p184, %p185
      %p187 = scmp.ne.s32.totalorder %s178, %s179
      %p188 = scmp.eq.s32.totalorder %s42, 0
      %p189 = por %p187, %p188
      %p190 = scmp.ne.s32.totalorder %s178, %s179
      %p191 = scmp.eq.s32.totalorder %s43, 1
      %p192 = por %p190, %p191
      %p194 = scmp.ne.s32.totalorder %s179, %s193
      %p195 = scmp.eq.s32.totalorder %s43, 0
      %p196 = por %p194, %p195
      %s198 = sadd.s32 %s197, 1
      %p201 = scmp.eq.s32.totalorder %s37, 1
      %p202 = scmp.ne.s32.totalorder %s197, %s199
      %p203 = scmp.eq.s32.totalorder %s37, 0
      %p204 = por %p202, %p203
      %p205 = scmp.ne.s32.totalorder %s197, %s199
      %p206 = scmp.eq.s32.totalorder %s42, 1
      %p207 = por %p205, %p206
      %p208 = scmp.ne.s32.totalorder %s199, %s200
      %p209 = scmp.eq.s32.totalorder %s42, 0
      %p210 = por %p208, %p209
      %p211 = scmp.ne.s32.totalorder %s199, %s200
      %p212 = scmp.eq.s32.totalorder %s43, 1
      %p213 = por %p211, %p212
      %p215 = scmp.ne.s32.totalorder %s200, %s214
      %p216 = scmp.eq.s32.totalorder %s43, 0
      %p217 = por %p215, %p216
      %s219 = sadd.s32 %s218, 1
      %p222 = scmp.eq.s32.totalorder %s37, 1
      %p223 = scmp.ne.s32.totalorder %s218, %s220
      %p224 = scmp.eq.s32.totalorder %s37, 0
      %p225 = por %p223, %p224
      %p226 = scmp.ne.s32.totalorder %s218, %s220
      %p227 = scmp.eq.s32.totalorder %s42, 1
      %p228 = por %p226, %p227
      %p229 = scmp.ne.s32.totalorder %s220, %s221
      %p230 = scmp.eq.s32.totalorder %s42, 0
      %p231 = por %p229, %p230
      %p232 = scmp.ne.s32.totalorder %s220, %s221
      %p233 = scmp.eq.s32.totalorder %s43, 1
      %p234 = por %p232, %p233
      %p236 = scmp.ne.s32.totalorder %s221, %s235
      %p237 = scmp.eq.s32.totalorder %s43, 0
      %p238 = por %p236, %p237
      %s240 = sadd.s32 %s239, 1
      %p243 = scmp.eq.s32.totalorder %s37, 1
      %p244 = scmp.ne.s32.totalorder %s239, %s241
      %p245 = scmp.eq.s32.totalorder %s37, 0
      %p246 = por %p244, %p245
      %p247 = scmp.ne.s32.totalorder %s239, %s241
      %p248 = scmp.eq.s32.totalorder %s42, 1
      %p249 = por %p247, %p248
      %p250 = scmp.ne.s32.totalorder %s241, %s242
      %p251 = scmp.eq.s32.totalorder %s42, 0
      %p252 = por %p250, %p251
      %p253 = scmp.ne.s32.totalorder %s241, %s242
      %p254 = scmp.eq.s32.totalorder %s43, 1
      %p255 = por %p253, %p254
      %p257 = scmp.ne.s32.totalorder %s242, %s256
      %p258 = scmp.eq.s32.totalorder %s43, 0
      %p259 = por %p257, %p258
      %s261 = sadd.s32 %s260, 1
      %p264 = scmp.eq.s32.totalorder %s37, 1
      %p265 = scmp.ne.s32.totalorder %s260, %s262
      %p266 = scmp.eq.s32.totalorder %s37, 0
      %p267 = por %p265, %p266
      %p268 = scmp.ne.s32.totalorder %s260, %s262
      %p269 = scmp.eq.s32.totalorder %s42, 1
      %p270 = por %p268, %p269
      %p271 = scmp.ne.s32.totalorder %s262, %s263
      %p272 = scmp.eq.s32.totalorder %s42, 0
      %p273 = por %p271, %p272
      %p274 = scmp.ne.s32.totalorder %s262, %s263
      %p275 = scmp.eq.s32.totalorder %s43, 1
      %p276 = por %p274, %p275
      %p278 = scmp.ne.s32.totalorder %s263, %s277
      %p279 = scmp.eq.s32.totalorder %s43, 0
      %p280 = por %p278, %p279
      %s282 = sadd.s32 %s281, 1
      %p285 = scmp.eq.s32.totalorder %s37, 1
      %p286 = scmp.ne.s32.totalorder %s281, %s283
      %p287 = scmp.eq.s32.totalorder %s37, 0
      %p288 = por %p286, %p287
      %p289 = scmp.ne.s32.totalorder %s281, %s283
      %p290 = scmp.eq.s32.totalorder %s42, 1
      %p291 = por %p289, %p290
      %p292 = scmp.ne.s32.totalorder %s283, %s284
      %p293 = scmp.eq.s32.totalorder %s42, 0
      %p294 = por %p292, %p293
      %p295 = scmp.ne.s32.totalorder %s283, %s284
      %p296 = scmp.eq.s32.totalorder %s43, 1
      %p297 = por %p295, %p296
      %p299 = scmp.ne.s32.totalorder %s284, %s298
      %p300 = scmp.eq.s32.totalorder %s43, 0
      %p301 = por %p299, %p300
      %s303 = sadd.s32 %s302, 1
      %p306 = scmp.eq.s32.totalorder %s37, 1
      %p307 = scmp.ne.s32.totalorder %s302, %s304
      %p308 = scmp.eq.s32.totalorder %s37, 0
      %p309 = por %p307, %p308
      %p310 = scmp.ne.s32.totalorder %s302, %s304
      %p311 = scmp.eq.s32.totalorder %s42, 1
      %p312 = por %p310, %p311
      %p313 = scmp.ne.s32.totalorder %s304, %s305
      %p314 = scmp.eq.s32.totalorder %s42, 0
      %p315 = por %p313, %p314
      %p316 = scmp.ne.s32.totalorder %s304, %s305
      %p317 = scmp.eq.s32.totalorder %s43, 1
      %p318 = por %p316, %p317
      %p320 = scmp.ne.s32.totalorder %s305, %s319
      %p321 = scmp.eq.s32.totalorder %s43, 0
      %p322 = por %p320, %p321
      %s324 = sadd.s32 %s323, 1
      %p327 = scmp.eq.s32.totalorder %s37, 1
      %p328 = scmp.ne.s32.totalorder %s323, %s325
      %p329 = scmp.eq.s32.totalorder %s37, 0
      %p330 = por %p328, %p329
      %p331 = scmp.ne.s32.totalorder %s323, %s325
      %p332 = scmp.eq.s32.totalorder %s42, 1
      %p333 = por %p331, %p332
      %p334 = scmp.ne.s32.totalorder %s325, %s326
      %p335 = scmp.eq.s32.totalorder %s42, 0
      %p336 = por %p334, %p335
      %p337 = scmp.ne.s32.totalorder %s325, %s326
      %p338 = scmp.eq.s32.totalorder %s43, 1
      %p339 = por %p337, %p338
      %p341 = scmp.ne.s32.totalorder %s326, %s340
      %p342 = scmp.eq.s32.totalorder %s43, 0
      %p343 = por %p341, %p342
      %s345 = sadd.s32 %s344, 1
      %p348 = scmp.eq.s32.totalorder %s37, 1
      %p349 = scmp.ne.s32.totalorder %s344, %s346
      %p350 = scmp.eq.s32.totalorder %s37, 0
      %p351 = por %p349, %p350
      %p352 = scmp.ne.s32.totalorder %s344, %s346
      %p353 = scmp.eq.s32.totalorder %s42, 1
      %p354 = por %p352, %p353
      %p355 = scmp.ne.s32.totalorder %s346, %s347
      %p356 = scmp.eq.s32.totalorder %s42, 0
      %p357 = por %p355, %p356
      %p358 = scmp.ne.s32.totalorder %s346, %s347
      %p359 = scmp.eq.s32.totalorder %s43, 1
      %p360 = por %p358, %p359
      %p362 = scmp.ne.s32.totalorder %s347, %s361
      %p363 = scmp.eq.s32.totalorder %s43, 0
      %p364 = por %p362, %p363
      %s366 = sadd.s32 %s365, 1
      %p369 = scmp.eq.s32.totalorder %s37, 1
      %p370 = scmp.ne.s32.totalorder %s365, %s367
      %p371 = scmp.eq.s32.totalorder %s37, 0
      %p372 = por %p370, %p371
      %p373 = scmp.ne.s32.totalorder %s365, %s367
      %p374 = scmp.eq.s32.totalorder %s42, 1
      %p375 = por %p373, %p374
      %p376 = scmp.ne.s32.totalorder %s367, %s368
      %p377 = scmp.eq.s32.totalorder %s42, 0
      %p378 = por %p376, %p377
      %p379 = scmp.ne.s32.totalorder %s367, %s368
      %p380 = scmp.eq.s32.totalorder %s43, 1
      %p381 = por %p379, %p380
      %p383 = scmp.ne.s32.totalorder %s368, %s382
      %p384 = scmp.eq.s32.totalorder %s43, 0
      %p385 = por %p383, %p384
      %s387 = sadd.s32 %s386, 1
      %p390 = scmp.eq.s32.totalorder %s37, 1
      %p391 = scmp.ne.s32.totalorder %s386, %s388
      %p392 = scmp.eq.s32.totalorder %s37, 0
      %p393 = por %p391, %p392
      %p394 = scmp.ne.s32.totalorder %s386, %s388
      %p395 = scmp.eq.s32.totalorder %s42, 1
      %p396 = por %p394, %p395
      %p397 = scmp.ne.s32.totalorder %s388, %s389
      %p398 = scmp.eq.s32.totalorder %s42, 0
      %p399 = por %p397, %p398
      %p400 = scmp.ne.s32.totalorder %s388, %s389
      %p401 = scmp.eq.s32.totalorder %s43, 1
      %p402 = por %p400, %p401
      %p404 = scmp.ne.s32.totalorder %s389, %s403
      %p405 = scmp.eq.s32.totalorder %s43, 0
      %p406 = por %p404, %p405
      %s407 = ssub.s32 %s37, %s44
      %p408 = scmp.eq.s32.totalorder %s407, 0
      %s410 = sadd.s32 %s409, 1
      %s411 = scalar_select %p408, %s409, %s410
      %p414 = pneg %p408
      %p415 = scmp.eq.s32.totalorder %s37, 1
      %p416 = por %p414, %p415
      %p417 = scmp.ne.s32.totalorder %s409, %s412
      %p418 = scmp.eq.s32.totalorder %s37, 0
      %p419 = por %p417, %p418
      %p420 = scmp.ne.s32.totalorder %s409, %s412
      %p421 = scmp.eq.s32.totalorder %s42, 1
      %p422 = por %p420, %p421
      %p423 = scmp.ne.s32.totalorder %s412, %s413
      %p424 = scmp.eq.s32.totalorder %s42, 0
      %p425 = por %p423, %p424
      %p426 = scmp.ne.s32.totalorder %s412, %s413
      %p427 = scmp.eq.s32.totalorder %s43, 1
      %p428 = por %p426, %p427
      %p430 = scmp.ne.s32.totalorder %s413, %s429
      %p431 = scmp.eq.s32.totalorder %s43, 0
      %p432 = por %p430, %p431
      %p433 = scmp.le.s32.totalorder 1, %s37
      %p434 = scmp.lt.s32.totalorder %s37, 3
      %p435 = pnand %p433, %p434
      %p436 = pneg %p435
      // Predicated region
      $region9: #{tpu_custom_call.1} parent=5 // pred_check
        _
      $region10: #{tpu_custom_call.1} parent=5 // pred_check_branch
        %438 = sbr.rel (%p435) target = $region12
      $region11: #{tpu_custom_call.1} parent=5 // pred_region
        %s439 = ssub.s32 %s37, 1
        // Predicated region
        $region13: #{tpu_custom_call.1} parent=11 // pred_check
          %p440 = pneg %p84
        $region14: #{tpu_custom_call.1} parent=11 // pred_check_branch
          %442 = sbr.rel (%p440) target = $region16
        $region15: #{tpu_custom_call.1} parent=11 // pred_region
          %s444 = ssub.s32 16, 16
          %445 = vsyncadd [#allocation6], %s444
          %s447 = sshll.u32 [#allocation5], 4
          %s448 = int_to_ptr.vmem [resolvable:$true] %s447
          %450 = dma.hbm_to_vmem [thread:$0]  %s1, 16, %s448, [#allocation6]
        $region16: #{tpu_custom_call.1} parent=11 // pred_fallthru
          _
        // Predicated region
        $region17: #{tpu_custom_call.1} parent=11 // pred_check
          %p451 = pneg %p105
        $region18: #{tpu_custom_call.1} parent=11 // pred_check_branch
          %453 = sbr.rel (%p451) target = $region20
        $region19: #{tpu_custom_call.1} parent=11 // pred_region
          %s455 = ssub.s32 16, 16
          %456 = vsyncadd [#allocation6], %s455
          %s458 = sshll.u32 [#allocation7], 4
          %s459 = int_to_ptr.vmem [resolvable:$true] %s458
          %461 = dma.hbm_to_vmem [thread:$0]  %s2, 16, %s459, [#allocation6]
        $region20: #{tpu_custom_call.1} parent=11 // pred_fallthru
          _
        // Predicated region
        $region21: #{tpu_custom_call.1} parent=11 // pred_check
          %p462 = pneg %p126
        $region22: #{tpu_custom_call.1} parent=11 // pred_check_branch
          %464 = sbr.rel (%p462) target = $region24
        $region23: #{tpu_custom_call.1} parent=11 // pred_region
          %s466 = ssub.s32 256, 256
          %467 = vsyncadd [#allocation9], %s466
          %s468 = sshll.u32 [#allocation8], 4
          %s469 = int_to_ptr.vmem [resolvable:$true] %s468
          %474 = dma.hbm_to_vmem [thread:$0]  %s3, 256, %s469, [#allocation9], 64, 64, 4
        $region24: #{tpu_custom_call.1} parent=11 // pred_fallthru
          _
        // Predicated region
        $region25: #{tpu_custom_call.1} parent=11 // pred_check
          %p475 = pneg %p147
        $region26: #{tpu_custom_call.1} parent=11 // pred_check_branch
          %477 = sbr.rel (%p475) target = $region28
        $region27: #{tpu_custom_call.1} parent=11 // pred_region
          %s479 = ssub.s32 16, 16
          %480 = vsyncadd [#allocation9], %s479
          %s482 = sshll.u32 [#allocation10], 4
          %s483 = int_to_ptr.vmem [resolvable:$true] %s482
          %485 = dma.hbm_to_vmem [thread:$0]  %s4, 16, %s483, [#allocation9]
        $region28: #{tpu_custom_call.1} parent=11 // pred_fallthru
          _
        // Predicated region
        $region29: #{tpu_custom_call.1} parent=11 // pred_check
          %p486 = pneg %p168
        $region30: #{tpu_custom_call.1} parent=11 // pred_check_branch
          %488 = sbr.rel (%p486) target = $region32
        $region31: #{tpu_custom_call.1} parent=11 // pred_region
          %s490 = ssub.s32 256, 256
          %491 = vsyncadd [#allocation12], %s490
          %s492 = sshll.u32 [#allocation11], 4
          %s493 = int_to_ptr.vmem [resolvable:$true] %s492
          %498 = dma.hbm_to_vmem [thread:$0]  %s5, 256, %s493, [#allocation12], 64, 64, 4
        $region32: #{tpu_custom_call.1} parent=11 // pred_fallthru
          _
        // Predicated region
        $region33: #{tpu_custom_call.1} parent=11 // pred_check
          %p499 = pneg %p189
        $region34: #{tpu_custom_call.1} parent=11 // pred_check_branch
          %501 = sbr.rel (%p499) target = $region36
        $region35: #{tpu_custom_call.1} parent=11 // pred_region
          %s503 = ssub.s32 16, 16
          %504 = vsyncadd [#allocation12], %s503
          %s506 = sshll.u32 [#allocation13], 4
          %s507 = int_to_ptr.vmem [resolvable:$true] %s506
          %509 = dma.hbm_to_vmem [thread:$0]  %s6, 16, %s507, [#allocation12]
        $region36: #{tpu_custom_call.1} parent=11 // pred_fallthru
          _
        // Predicated region
        $region37: #{tpu_custom_call.1} parent=11 // pred_check
          %p510 = pneg %p210
        $region38: #{tpu_custom_call.1} parent=11 // pred_check_branch
          %512 = sbr.rel (%p510) target = $region40
        $region39: #{tpu_custom_call.1} parent=11 // pred_region
          %s514 = ssub.s32 256, 256
          %515 = vsyncadd [#allocation15], %s514
          %s516 = sshll.u32 [#allocation14], 4
          %s517 = int_to_ptr.vmem [resolvable:$true] %s516
          %522 = dma.hbm_to_vmem [thread:$0]  %s7, 256, %s517, [#allocation15], 64, 64, 4
        $region40: #{tpu_custom_call.1} parent=11 // pred_fallthru
          _
        // Predicated region
        $region41: #{tpu_custom_call.1} parent=11 // pred_check
          %p523 = pneg %p231
        $region42: #{tpu_custom_call.1} parent=11 // pred_check_branch
          %525 = sbr.rel (%p523) target = $region44
        $region43: #{tpu_custom_call.1} parent=11 // pred_region
          %s527 = ssub.s32 16, 16
          %528 = vsyncadd [#allocation15], %s527
          %s530 = sshll.u32 [#allocation16], 4
          %s531 = int_to_ptr.vmem [resolvable:$true] %s530
          %533 = dma.hbm_to_vmem [thread:$0]  %s8, 16, %s531, [#allocation15]
        $region44: #{tpu_custom_call.1} parent=11 // pred_fallthru
          _
        // Predicated region
        $region45: #{tpu_custom_call.1} parent=11 // pred_check
          %p534 = pneg %p252
        $region46: #{tpu_custom_call.1} parent=11 // pred_check_branch
          %536 = sbr.rel (%p534) target = $region48
        $region47: #{tpu_custom_call.1} parent=11 // pred_region
          %s538 = ssub.s32 256, 256
          %539 = vsyncadd [#allocation18], %s538
          %s540 = sshll.u32 [#allocation17], 4
          %s541 = int_to_ptr.vmem [resolvable:$true] %s540
          %546 = dma.hbm_to_vmem [thread:$0]  %s9, 256, %s541, [#allocation18], 64, 64, 4
        $region48: #{tpu_custom_call.1} parent=11 // pred_fallthru
          _
        // Predicated region
        $region49: #{tpu_custom_call.1} parent=11 // pred_check
          %p547 = pneg %p273
        $region50: #{tpu_custom_call.1} parent=11 // pred_check_branch
          %549 = sbr.rel (%p547) target = $region52
        $region51: #{tpu_custom_call.1} parent=11 // pred_region
          %s551 = ssub.s32 16, 16
          %552 = vsyncadd [#allocation18], %s551
          %s554 = sshll.u32 [#allocation19], 4
          %s555 = int_to_ptr.vmem [resolvable:$true] %s554
          %557 = dma.hbm_to_vmem [thread:$0]  %s10, 16, %s555, [#allocation18]
        $region52: #{tpu_custom_call.1} parent=11 // pred_fallthru
          _
        // Predicated region
        $region53: #{tpu_custom_call.1} parent=11 // pred_check
          %p558 = pneg %p294
        $region54: #{tpu_custom_call.1} parent=11 // pred_check_branch
          %560 = sbr.rel (%p558) target = $region56
        $region55: #{tpu_custom_call.1} parent=11 // pred_region
          %s562 = ssub.s32 16, 16
          %563 = vsyncadd [#allocation21], %s562
          %s565 = sshll.u32 [#allocation20], 4
          %s566 = int_to_ptr.vmem [resolvable:$true] %s565
          %568 = dma.hbm_to_vmem [thread:$0]  %s11, 16, %s566, [#allocation21]
        $region56: #{tpu_custom_call.1} parent=11 // pred_fallthru
          _
        // Predicated region
        $region57: #{tpu_custom_call.1} parent=11 // pred_check
          %p569 = pneg %p315
        $region58: #{tpu_custom_call.1} parent=11 // pred_check_branch
          %571 = sbr.rel (%p569) target = $region60
        $region59: #{tpu_custom_call.1} parent=11 // pred_region
          %s573 = ssub.s32 16, 16
          %574 = vsyncadd [#allocation21], %s573
          %s576 = sshll.u32 [#allocation22], 4
          %s577 = int_to_ptr.vmem [resolvable:$true] %s576
          %579 = dma.hbm_to_vmem [thread:$0]  %s12, 16, %s577, [#allocation21]
        $region60: #{tpu_custom_call.1} parent=11 // pred_fallthru
          _
        // Predicated region
        $region61: #{tpu_custom_call.1} parent=11 // pred_check
          %p580 = pneg %p336
        $region62: #{tpu_custom_call.1} parent=11 // pred_check_branch
          %582 = sbr.rel (%p580) target = $region64
        $region63: #{tpu_custom_call.1} parent=11 // pred_region
          %s584 = ssub.s32 256, 256
          %585 = vsyncadd [#allocation24], %s584
          %s586 = sshll.u32 [#allocation23], 4
          %s587 = int_to_ptr.vmem [resolvable:$true] %s586
          %592 = dma.hbm_to_vmem [thread:$0]  %s13, 256, %s587, [#allocation24], 64, 64, 4
        $region64: #{tpu_custom_call.1} parent=11 // pred_fallthru
          _
        // Predicated region
        $region65: #{tpu_custom_call.1} parent=11 // pred_check
          %p593 = pneg %p357
        $region66: #{tpu_custom_call.1} parent=11 // pred_check_branch
          %595 = sbr.rel (%p593) target = $region68
        $region67: #{tpu_custom_call.1} parent=11 // pred_region
          %s597 = ssub.s32 16, 16
          %598 = vsyncadd [#allocation24], %s597
          %s600 = sshll.u32 [#allocation25], 4
          %s601 = int_to_ptr.vmem [resolvable:$true] %s600
          %603 = dma.hbm_to_vmem [thread:$0]  %s14, 16, %s601, [#allocation24]
        $region68: #{tpu_custom_call.1} parent=11 // pred_fallthru
          _
        // Predicated region
        $region69: #{tpu_custom_call.1} parent=11 // pred_check
          %p604 = pneg %p378
        $region70: #{tpu_custom_call.1} parent=11 // pred_check_branch
          %606 = sbr.rel (%p604) target = $region72
        $region71: #{tpu_custom_call.1} parent=11 // pred_region
          %s608 = ssub.s32 1024, 1024
          %609 = vsyncadd [#allocation27], %s608
          %s610 = sshll.u32 [#allocation26], 4
          %s611 = int_to_ptr.vmem [resolvable:$true] %s610
          %616 = dma.hbm_to_vmem [thread:$0]  %s15, 1024, %s611, [#allocation27], 64, 64, 4
        $region72: #{tpu_custom_call.1} parent=11 // pred_fallthru
          _
        // Predicated region
        $region73: #{tpu_custom_call.1} parent=11 // pred_check
          %p617 = pneg %p399
        $region74: #{tpu_custom_call.1} parent=11 // pred_check_branch
          %619 = sbr.rel (%p617) target = $region76
        $region75: #{tpu_custom_call.1} parent=11 // pred_region
          %s621 = ssub.s32 16, 16
          %622 = vsyncadd [#allocation27], %s621
          %s624 = sshll.u32 [#allocation28], 4
          %s625 = int_to_ptr.vmem [resolvable:$true] %s624
          %627 = dma.hbm_to_vmem [thread:$0]  %s16, 16, %s625, [#allocation27]
        $region76: #{tpu_custom_call.1} parent=11 // pred_fallthru
          _
      $region12: #{tpu_custom_call.1} parent=5 // pred_fallthru
        _
      %p628 = scmp.lt.s32.totalorder %s37, 2
      // Predicated region
      $region77: #{tpu_custom_call.1} parent=5 // pred_check
        %p629 = pneg %p628
      $region78: #{tpu_custom_call.1} parent=5 // pred_check_branch
        %631 = sbr.rel (%p629) target = $region80
      $region79: #{tpu_custom_call.1} parent=5 // pred_region
        // Predicated region
        $region81: #{tpu_custom_call.1} parent=79 // pred_check
          %p632 = pneg %p57
        $region82: #{tpu_custom_call.1} parent=79 // pred_check_branch
          %634 = sbr.rel (%p632) target = $region84
        $region83: #{tpu_custom_call.1} parent=79 // pred_region
          %s635 = sand.u32 %s47, 1
          %s636 = scalar_lea.sflag [#allocation3], %s635
          %s637 = sand.u32 %s47, 1
          %s638 = smul.addr %s637, 8
          %s639 = scalar_lea.vmem [#allocation2], %s638
          %s641 = ssub.s32 128, 128
          %642 = vsyncadd %s636, %s641
          %s643 = smul.addr %s37, 128
          %s644 = scalar_lea.hbm %s0, %s643
          %s646 = sshll.u32 %s639, 4
          %s647 = int_to_ptr.vmem [resolvable:$true] %s646
          %649 = dma.hbm_to_vmem [thread:$0]  %s644, 128, %s647, %s636
        $region84: #{tpu_custom_call.1} parent=79 // pred_fallthru
          _
      $region80: #{tpu_custom_call.1} parent=5 // pred_fallthru
        _
      %p650 = scmp.le.s32.totalorder 1, %s37
      %p651 = scmp.lt.s32.totalorder %s37, 3
      %p652 = pnand %p650, %p651
      %p653 = pneg %p652
      // Predicated region
      $region85: #{tpu_custom_call.1} parent=5 // pred_check
        _
      $region86: #{tpu_custom_call.1} parent=5 // pred_check_branch
        %655 = sbr.rel (%p652) target = $region88
      $region87: #{tpu_custom_call.1} parent=5 // pred_region
        %s656 = ssub.s32 %s37, 1
        %s657 = sand.u32 %s50, 1
        %s658 = scalar_lea.sflag [#allocation3], %s657
        %s659 = sand.u32 %s50, 1
        %s660 = smul.addr %s659, 8
        %s661 = scalar_lea.vmem [#allocation2], %s660
        // Predicated region
        $region89: #{tpu_custom_call.1} parent=87 // pred_check
          %p662 = pneg %p63
        $region90: #{tpu_custom_call.1} parent=87 // pred_check_branch
          %664 = sbr.rel (%p662) target = $region92
        $region91: #{tpu_custom_call.1} parent=87 // pred_region
          %665 = dma.done %s658, 128
        $region92: #{tpu_custom_call.1} parent=87 // pred_fallthru
          _
        // Predicated region
        $region93: #{tpu_custom_call.1} parent=87 // pred_check
          %p666 = pneg %p84
        $region94: #{tpu_custom_call.1} parent=87 // pred_check_branch
          %668 = sbr.rel (%p666) target = $region96
        $region95: #{tpu_custom_call.1} parent=87 // pred_region
          %669 = dma.done [#allocation6], 16
        $region96: #{tpu_custom_call.1} parent=87 // pred_fallthru
          _
        // Predicated region
        $region97: #{tpu_custom_call.1} parent=87 // pred_check
          %p670 = pneg %p105
        $region98: #{tpu_custom_call.1} parent=87 // pred_check_branch
          %672 = sbr.rel (%p670) target = $region100
        $region99: #{tpu_custom_call.1} parent=87 // pred_region
          %673 = dma.done [#allocation6], 16
        $region100: #{tpu_custom_call.1} parent=87 // pred_fallthru
          _
        // Predicated region
        $region101: #{tpu_custom_call.1} parent=87 // pred_check
          %p674 = pneg %p126
        $region102: #{tpu_custom_call.1} parent=87 // pred_check_branch
          %676 = sbr.rel (%p674) target = $region104
        $region103: #{tpu_custom_call.1} parent=87 // pred_region
          %677 = dma.done [#allocation9], 256
        $region104: #{tpu_custom_call.1} parent=87 // pred_fallthru
          _
        // Predicated region
        $region105: #{tpu_custom_call.1} parent=87 // pred_check
          %p678 = pneg %p147
        $region106: #{tpu_custom_call.1} parent=87 // pred_check_branch
          %680 = sbr.rel (%p678) target = $region108
        $region107: #{tpu_custom_call.1} parent=87 // pred_region
          %681 = dma.done [#allocation9], 16
        $region108: #{tpu_custom_call.1} parent=87 // pred_fallthru
          _
        // Predicated region
        $region109: #{tpu_custom_call.1} parent=87 // pred_check
          %p682 = pneg %p168
        $region110: #{tpu_custom_call.1} parent=87 // pred_check_branch
          %684 = sbr.rel (%p682) target = $region112
        $region111: #{tpu_custom_call.1} parent=87 // pred_region
          %685 = dma.done [#allocation12], 256
        $region112: #{tpu_custom_call.1} parent=87 // pred_fallthru
          _
        // Predicated region
        $region113: #{tpu_custom_call.1} parent=87 // pred_check
          %p686 = pneg %p189
        $region114: #{tpu_custom_call.1} parent=87 // pred_check_branch
          %688 = sbr.rel (%p686) target = $region116
        $region115: #{tpu_custom_call.1} parent=87 // pred_region
          %689 = dma.done [#allocation12], 16
        $region116: #{tpu_custom_call.1} parent=87 // pred_fallthru
          _
        // Predicated region
        $region117: #{tpu_custom_call.1} parent=87 // pred_check
          %p690 = pneg %p210
        $region118: #{tpu_custom_call.1} parent=87 // pred_check_branch
          %692 = sbr.rel (%p690) target = $region120
        $region119: #{tpu_custom_call.1} parent=87 // pred_region
          %693 = dma.done [#allocation15], 256
        $region120: #{tpu_custom_call.1} parent=87 // pred_fallthru
          _
        // Predicated region
        $region121: #{tpu_custom_call.1} parent=87 // pred_check
          %p694 = pneg %p231
        $region122: #{tpu_custom_call.1} parent=87 // pred_check_branch
          %696 = sbr.rel (%p694) target = $region124
        $region123: #{tpu_custom_call.1} parent=87 // pred_region
          %697 = dma.done [#allocation15], 16
        $region124: #{tpu_custom_call.1} parent=87 // pred_fallthru
          _
        // Predicated region
        $region125: #{tpu_custom_call.1} parent=87 // pred_check
          %p698 = pneg %p252
        $region126: #{tpu_custom_call.1} parent=87 // pred_check_branch
          %700 = sbr.rel (%p698) target = $region128
        $region127: #{tpu_custom_call.1} parent=87 // pred_region
          %701 = dma.done [#allocation18], 256
        $region128: #{tpu_custom_call.1} parent=87 // pred_fallthru
          _
        // Predicated region
        $region129: #{tpu_custom_call.1} parent=87 // pred_check
          %p702 = pneg %p273
        $region130: #{tpu_custom_call.1} parent=87 // pred_check_branch
          %704 = sbr.rel (%p702) target = $region132
        $region131: #{tpu_custom_call.1} parent=87 // pred_region
          %705 = dma.done [#allocation18], 16
        $region132: #{tpu_custom_call.1} parent=87 // pred_fallthru
          _
        // Predicated region
        $region133: #{tpu_custom_call.1} parent=87 // pred_check
          %p706 = pneg %p294
        $region134: #{tpu_custom_call.1} parent=87 // pred_check_branch
          %708 = sbr.rel (%p706) target = $region136
        $region135: #{tpu_custom_call.1} parent=87 // pred_region
          %709 = dma.done [#allocation21], 16
        $region136: #{tpu_custom_call.1} parent=87 // pred_fallthru
          _
        // Predicated region
        $region137: #{tpu_custom_call.1} parent=87 // pred_check
          %p710 = pneg %p315
        $region138: #{tpu_custom_call.1} parent=87 // pred_check_branch
          %712 = sbr.rel (%p710) target = $region140
        $region139: #{tpu_custom_call.1} parent=87 // pred_region
          %713 = dma.done [#allocation21], 16
        $region140: #{tpu_custom_call.1} parent=87 // pred_fallthru
          _
        // Predicated region
        $region141: #{tpu_custom_call.1} parent=87 // pred_check
          %p714 = pneg %p336
        $region142: #{tpu_custom_call.1} parent=87 // pred_check_branch
          %716 = sbr.rel (%p714) target = $region144
        $region143: #{tpu_custom_call.1} parent=87 // pred_region
          %717 = dma.done [#allocation24], 256
        $region144: #{tpu_custom_call.1} parent=87 // pred_fallthru
          _
        // Predicated region
        $region145: #{tpu_custom_call.1} parent=87 // pred_check
          %p718 = pneg %p357
        $region146: #{tpu_custom_call.1} parent=87 // pred_check_branch
          %720 = sbr.rel (%p718) target = $region148
        $region147: #{tpu_custom_call.1} parent=87 // pred_region
          %721 = dma.done [#allocation24], 16
        $region148: #{tpu_custom_call.1} parent=87 // pred_fallthru
          _
        // Predicated region
        $region149: #{tpu_custom_call.1} parent=87 // pred_check
          %p722 = pneg %p378
        $region150: #{tpu_custom_call.1} parent=87 // pred_check_branch
          %724 = sbr.rel (%p722) target = $region152
        $region151: #{tpu_custom_call.1} parent=87 // pred_region
          %725 = dma.done [#allocation27], 1024
        $region152: #{tpu_custom_call.1} parent=87 // pred_fallthru
          _
        // Predicated region
        $region153: #{tpu_custom_call.1} parent=87 // pred_check
          %p726 = pneg %p399
        $region154: #{tpu_custom_call.1} parent=87 // pred_check_branch
          %728 = sbr.rel (%p726) target = $region156
        $region155: #{tpu_custom_call.1} parent=87 // pred_region
          %729 = dma.done [#allocation27], 16
        $region156: #{tpu_custom_call.1} parent=87 // pred_fallthru
          _
        %s730 = sand.u32 %s50, 1
        %s731 = scalar_lea.sflag [#allocation3], %s730
        %s732 = sand.u32 %s50, 1
        %s733 = smul.addr %s732, 8
        %s734 = scalar_lea.vmem [#allocation2], %s733
        %p735 = pneg %p63
        %p736 = pneg %p60
        %p737 = pneg %p84
        %p738 = pneg %p81
        %p739 = pneg %p105
        %p740 = pneg %p102
        %p741 = pneg %p126
        %p742 = pneg %p123
        %p743 = pneg %p147
        %p744 = pneg %p144
        %p745 = pneg %p168
        %p746 = pneg %p165
        %p747 = pneg %p189
        %p748 = pneg %p186
        %p749 = pneg %p210
        %p750 = pneg %p207
        %p751 = pneg %p231
        %p752 = pneg %p228
        %p753 = pneg %p252
        %p754 = pneg %p249
        %p755 = pneg %p273
        %p756 = pneg %p270
        %p757 = pneg %p294
        %p758 = pneg %p291
        %p759 = pneg %p315
        %p760 = pneg %p312
        %p761 = pneg %p336
        %p762 = pneg %p333
        %p763 = pneg %p357
        %p764 = pneg %p354
        %p765 = pneg %p378
        %p766 = pneg %p375
        %p767 = pneg %p399
        %p768 = pneg %p396
        %p769 = pneg %p425
        %p770 = pneg %p422
        %s771 = sand.u32 %s412, 1
        %s772 = scalar_lea.sflag [#allocation4], %s771
        %s773 = sand.u32 %s412, 1
        %s774 = smul.addr %s773, 8
        %s775 = scalar_lea.vmem [#allocation29], %s774
        %v777 = vld [vmem:[%s661] sm:$0xff]
        %v778 = vld [vmem:[#allocation5] sm:$0x1]
        %v779 = vld [vmem:[#allocation7] sm:$0x1]
        %vm780 = vcmask 261120
        %v781 = vsel %vm780, %v777, 0.0
        %782 = vadd.xlane.f32.xlu0 %v781
        %v783 = vpop.xlane.xlu0 %782
        %v784 = vrcp.pop 32.0
        %v785 = vmul.f32 %v783, %v784
        %v786 = vsub.f32 %v777, %v785
        %v787 = vmul.f32 %v786, %v786
        %v788 = vsel %vm780, %v787, 0.0
        %789 = vadd.xlane.f32.xlu0 %v788
        %v790 = vpop.xlane.xlu0 %789
        %v791 = vmul.f32 %v790, %v784
        %v792 = vadd.f32 %v791, 1e-05
        %v793 = vrsqrt.pop %v792
        %v794 = vmul.f32 %v786, %v793
        %v796 = vlaneseq
        %v797 = vshrl.u32 %v796, 7
        %v798 = vsub.s32 0, %v797
        %v799 = vrot.slane %v778, %v798
        %v801 = vmul.f32 %v794, %v799
        %v803 = vlaneseq
        %v804 = vshrl.u32 %v803, 7
        %v805 = vsub.s32 0, %v804
        %v806 = vrot.slane %v779, %v805
        %v808 = vadd.f32 %v801, %v806
        %v809 = vpack.c.bf16 %v808, %v808
        %v810 = vld [vmem:[#allocation8] sm:$0xf]
        %v811 = vld [vmem:[#allocation8 + $0x4] sm:$0xf]
        %v812 = vld [vmem:[#allocation8 + $0x8] sm:$0xf]
        %v813 = vld [vmem:[#allocation8 + $0xc] sm:$0xf]
        %v814 = vld [vmem:[#allocation10] sm:$0x1]
        %v816 = vlaneseq
        %v817 = vshrl.u32 %v816, 7
        %v818 = vsub.s32 0, %v817
        %v819 = vrot.slane %v814, %v818
        %v825 = vunpack.c.l.b16 %v810
        %v826 = vunpack.c.l.b16 %v811
        %v827 = vunpack.c.l.b16 %v812
        %v828 = vunpack.c.l.b16 %v813
        %v829 = vpack.c.b16 %v826, %v825
        %v830 = vpack.c.b16 %v828, %v827
        %v834 = vsel %vm780, %v809, 0
        %836 = vmatprep.subr.bf16.mxu0 0
        %837 = vmatpush1.bf16.msra.mxu0 %v829
        %838 = vmatprep.subr.bf16.mxu0 0
        %839 = vmatpush1.bf16.msra.mxu0 %v830
        %840 = vmatprep.subr.bf16.mxu0 0
        %841 = vmatpush1.bf16.msra.mxu0 0
        %842 = vmatprep.subr.bf16.mxu0 0
        %843 = vmatpush1.bf16.msra.mxu0 0
        %844 = vmatprep.subr.bf16.mxu0 0
        %845 = vmatpush1.bf16.msra.mxu0 0
        %846 = vmatprep.subr.bf16.mxu0 0
        %847 = vmatpush1.bf16.msra.mxu0 0
        %848 = vmatprep.subr.bf16.mxu0 0
        %849 = vmatpush1.bf16.msra.mxu0 0
        %850 = vmatprep.subr.bf16.mxu0 0
        %851 = vmatpush1.bf16.msra.mxu0 0
        %852 = vmatprep.subr.bf16.mxu0 0
        %853 = vmatpush1.bf16.msra.mxu0 0
        %854 = vmatprep.subr.bf16.mxu0 0
        %855 = vmatpush1.bf16.msra.mxu0 0
        %856 = vmatprep.subr.bf16.mxu0 0
        %857 = vmatpush1.bf16.msra.mxu0 0
        %858 = vmatprep.subr.bf16.mxu0 0
        %859 = vmatpush1.bf16.msra.mxu0 0
        %860 = vmatprep.subr.bf16.mxu0 0
        %861 = vmatpush1.bf16.msra.mxu0 0
        %862 = vmatprep.subr.bf16.mxu0 0
        %863 = vmatpush1.bf16.msra.mxu0 0
        %864 = vmatprep.subr.bf16.mxu0 0
        %865 = vmatpush1.bf16.msra.mxu0 0
        %866 = vmatprep.subr.bf16.mxu0 0
        %867 = vmatpush1.bf16.msra.mxu0 0
        %868 = vmatprep.mubr.bf16.mxu0 0
        %869 = vmatmul.mubr.bf16.gmra.mrb[0].mxu0 %v834
        %v870 = vpop.f32.mrb[0].mxu0
        %v871 = vadd.f32 %v819, %v870
        %v872 = vpop.f32.mrb[0].mxu0
        %v873 = vpop.f32.mrb[0].mxu0
        %v874 = vpop.f32.mrb[0].mxu0
        %875 = vdwg.mxu0
        %v876 = vld [vmem:[#allocation11] sm:$0xf]
        %v877 = vld [vmem:[#allocation11 + $0x4] sm:$0xf]
        %v878 = vld [vmem:[#allocation11 + $0x8] sm:$0xf]
        %v879 = vld [vmem:[#allocation11 + $0xc] sm:$0xf]
        %v880 = vld [vmem:[#allocation13] sm:$0x1]
        %v882 = vlaneseq
        %v883 = vshrl.u32 %v882, 7
        %v884 = vsub.s32 0, %v883
        %v885 = vrot.slane %v880, %v884
        %v891 = vunpack.c.l.b16 %v876
        %v892 = vunpack.c.l.b16 %v877
        %v893 = vunpack.c.l.b16 %v878
        %v894 = vunpack.c.l.b16 %v879
        %v895 = vpack.c.b16 %v892, %v891
        %v896 = vpack.c.b16 %v894, %v893
        %899 = vmatprep.subr.bf16.mxu0 0
        %900 = vmatpush1.bf16.msra.mxu0 %v895
        %901 = vmatprep.subr.bf16.mxu0 0
        %902 = vmatpush1.bf16.msra.mxu0 %v896
        %903 = vmatprep.subr.bf16.mxu0 0
        %904 = vmatpush1.bf16.msra.mxu0 0
        %905 = vmatprep.subr.bf16.mxu0 0
        %906 = vmatpush1.bf16.msra.mxu0 0
        %907 = vmatprep.subr.bf16.mxu0 0
        %908 = vmatpush1.bf16.msra.mxu0 0
        %909 = vmatprep.subr.bf16.mxu0 0
        %910 = vmatpush1.bf16.msra.mxu0 0
        %911 = vmatprep.subr.bf16.mxu0 0
        %912 = vmatpush1.bf16.msra.mxu0 0
        %913 = vmatprep.subr.bf16.mxu0 0
        %914 = vmatpush1.bf16.msra.mxu0 0
        %915 = vmatprep.subr.bf16.mxu0 0
        %916 = vmatpush1.bf16.msra.mxu0 0
        %917 = vmatprep.subr.bf16.mxu0 0
        %918 = vmatpush1.bf16.msra.mxu0 0
        %919 = vmatprep.subr.bf16.mxu0 0
        %920 = vmatpush1.bf16.msra.mxu0 0
        %921 = vmatprep.subr.bf16.mxu0 0
        %922 = vmatpush1.bf16.msra.mxu0 0
        %923 = vmatprep.subr.bf16.mxu0 0
        %924 = vmatpush1.bf16.msra.mxu0 0
        %925 = vmatprep.subr.bf16.mxu0 0
        %926 = vmatpush1.bf16.msra.mxu0 0
        %927 = vmatprep.subr.bf16.mxu0 0
        %928 = vmatpush1.bf16.msra.mxu0 0
        %929 = vmatprep.subr.bf16.mxu0 0
        %930 = vmatpush1.bf16.msra.mxu0 0
        %931 = vmatprep.mubr.bf16.mxu0 0
        %932 = vmatmul.mubr.bf16.gmra.mrb[0].mxu0 %v834
        %v933 = vpop.f32.mrb[0].mxu0
        %v934 = vadd.f32 %v885, %v933
        %v935 = vpop.f32.mrb[0].mxu0
        %v936 = vpop.f32.mrb[0].mxu0
        %v937 = vpop.f32.mrb[0].mxu0
        %938 = vdwg.mxu0
        %v939 = vld [vmem:[#allocation14] sm:$0xf]
        %v940 = vld [vmem:[#allocation14 + $0x4] sm:$0xf]
        %v941 = vld [vmem:[#allocation14 + $0x8] sm:$0xf]
        %v942 = vld [vmem:[#allocation14 + $0xc] sm:$0xf]
        %v943 = vld [vmem:[#allocation16] sm:$0x1]
        %v945 = vlaneseq
        %v946 = vshrl.u32 %v945, 7
        %v947 = vsub.s32 0, %v946
        %v948 = vrot.slane %v943, %v947
        %v954 = vunpack.c.l.b16 %v939
        %v955 = vunpack.c.l.b16 %v940
        %v956 = vunpack.c.l.b16 %v941
        %v957 = vunpack.c.l.b16 %v942
        %v958 = vpack.c.b16 %v955, %v954
        %v959 = vpack.c.b16 %v957, %v956
        %962 = vmatprep.subr.bf16.mxu0 0
        %963 = vmatpush1.bf16.msra.mxu0 %v958
        %964 = vmatprep.subr.bf16.mxu0 0
        %965 = vmatpush1.bf16.msra.mxu0 %v959
        %966 = vmatprep.subr.bf16.mxu0 0
        %967 = vmatpush1.bf16.msra.mxu0 0
        %968 = vmatprep.subr.bf16.mxu0 0
        %969 = vmatpush1.bf16.msra.mxu0 0
        %970 = vmatprep.subr.bf16.mxu0 0
        %971 = vmatpush1.bf16.msra.mxu0 0
        %972 = vmatprep.subr.bf16.mxu0 0
        %973 = vmatpush1.bf16.msra.mxu0 0
        %974 = vmatprep.subr.bf16.mxu0 0
        %975 = vmatpush1.bf16.msra.mxu0 0
        %976 = vmatprep.subr.bf16.mxu0 0
        %977 = vmatpush1.bf16.msra.mxu0 0
        %978 = vmatprep.subr.bf16.mxu0 0
        %979 = vmatpush1.bf16.msra.mxu0 0
        %980 = vmatprep.subr.bf16.mxu0 0
        %981 = vmatpush1.bf16.msra.mxu0 0
        %982 = vmatprep.subr.bf16.mxu0 0
        %983 = vmatpush1.bf16.msra.mxu0 0
        %984 = vmatprep.subr.bf16.mxu0 0
        %985 = vmatpush1.bf16.msra.mxu0 0
        %986 = vmatprep.subr.bf16.mxu0 0
        %987 = vmatpush1.bf16.msra.mxu0 0
        %988 = vmatprep.subr.bf16.mxu0 0
        %989 = vmatpush1.bf16.msra.mxu0 0
        %990 = vmatprep.subr.bf16.mxu0 0
        %991 = vmatpush1.bf16.msra.mxu0 0
        %992 = vmatprep.subr.bf16.mxu0 0
        %993 = vmatpush1.bf16.msra.mxu0 0
        %994 = vmatprep.mubr.bf16.mxu0 0
        %995 = vmatmul.mubr.bf16.gmra.mrb[0].mxu0 %v834
        %v996 = vpop.f32.mrb[0].mxu0
        %v997 = vadd.f32 %v948, %v996
        %v998 = vpop.f32.mrb[0].mxu0
        %v999 = vpop.f32.mrb[0].mxu0
        %v1000 = vpop.f32.mrb[0].mxu0
        %1001 = vdwg.mxu0
        %v1002 = vmul.f32 %v871, 0.35355338
        %v1003 = vpack.c.bf16 %v1002, %v1002
        %v1004 = vpack.c.bf16 %v934, %v934
        %v1005 = vpack.c.bf16 %v997, %v997
        %v1006 = vlaneseq
        %v1007 = vshrl.u32 %v1006, 7
        %v1008 = vlaneseq
        %v1009 = vand.u32 %v1008, 127
        %v1010 = vsub.s32 %v1007, 2
        %vm1011 = vcmp.ge.s32.totalorder %v1009, %v1010
        %v1012 = vmul.u32 %v1007, 2
        %vm1013 = vcmp.le.s32.totalorder %v1009, %v1012
        %vm1014 = vmand %vm1011, %vm1013
        %v1015 = vsub.s32 2, %v1007
        %vm1016 = vcmp.gt.s32.totalorder %v1015, 0
        %v1017 = vsel %vm1016, %v1015, 0
        %v1018 = vcvt.s32.f32 %v1017
        %vm1019 = vcmp.gt.f32.partialorder %v1018, 0.0
        %vm1020 = vcmask 64512
        %v1022 = vsel %vm1020, %v1003, 0
        %v1025 = vsel %vm1020, %v1004, 0
        %1027 = vmatprep.subr.bf16.mxu0 0
        %1028 = vmatpush1.bf16.xpose.msra.mxu0 %v1025
        %1029 = vmatprep.subr.bf16.mxu0 0
        %1030 = vmatpush1.bf16.xpose.msra.mxu0 0
        %1031 = vmatprep.subr.bf16.mxu0 0
        %1032 = vmatpush1.bf16.xpose.msra.mxu0 0
        %1033 = vmatprep.subr.bf16.mxu0 0
        %1034 = vmatpush1.bf16.xpose.msra.mxu0 0
        %1035 = vmatprep.subr.bf16.mxu0 0
        %1036 = vmatpush1.bf16.xpose.msra.mxu0 0
        %1037 = vmatprep.subr.bf16.mxu0 0
        %1038 = vmatpush1.bf16.xpose.msra.mxu0 0
        %1039 = vmatprep.subr.bf16.mxu0 0
        %1040 = vmatpush1.bf16.xpose.msra.mxu0 0
        %1041 = vmatprep.subr.bf16.mxu0 0
        %1042 = vmatpush1.bf16.xpose.msra.mxu0 0
        %1043 = vmatprep.subr.bf16.mxu0 0
        %1044 = vmatpush1.bf16.xpose.msra.mxu0 0
        %1045 = vmatprep.subr.bf16.mxu0 0
        %1046 = vmatpush1.bf16.xpose.msra.mxu0 0
        %1047 = vmatprep.subr.bf16.mxu0 0
        %1048 = vmatpush1.bf16.xpose.msra.mxu0 0
        %1049 = vmatprep.subr.bf16.mxu0 0
        %1050 = vmatpush1.bf16.xpose.msra.mxu0 0
        %1051 = vmatprep.subr.bf16.mxu0 0
        %1052 = vmatpush1.bf16.xpose.msra.mxu0 0
        %1053 = vmatprep.subr.bf16.mxu0 0
        %1054 = vmatpush1.bf16.xpose.msra.mxu0 0
        %1055 = vmatprep.subr.bf16.mxu0 0
        %1056 = vmatpush1.bf16.xpose.msra.mxu0 0
        %1057 = vmatprep.subr.bf16.mxu0 0
        %1058 = vmatpush1.bf16.xpose.msra.mxu0 0
        %1059 = vmatprep.mubr.bf16.mxu0 0
        %1060 = vmatmul.mubr.bf16.gmra.mrb[0].mxu0 %v1022
        %v1061 = vpop.f32.mrb[0].mxu0
        %v1062 = vadd.f32 0.0, %v1061
        %v1063 = vpop.f32.mrb[0].mxu0
        %v1064 = vpop.f32.mrb[0].mxu0
        %v1065 = vpop.f32.mrb[0].mxu0
        %1066 = vdwg.mxu0
        %v1067 = vsel %vm1014, %v1062, -inf
        %v1068 = vsel %vm1020, %v1067, -inf
        %1069 = vmax.xlane.f32.xlu0 %v1068
        %v1070 = vpop.xlane.xlu0 %1069
        %v1071 = vmax.f32 %v1070, 0.0
        %v1072 = vsel %vm1019, %v1071, %v1070
        %v1073 = vsub.f32 %v1067, %v1072
        %v1074 = vmul.f32 %v1073, 1.442695
        %v1075 = vpow.pop %v1074
        %v1076 = vsel %vm1014, %v1075, 0.0
        %v1077 = vsub.f32 0.0, %v1072
        %v1078 = vmin.f32 %v1077, 0.0
        %v1079 = vmul.f32 %v1078, 1.442695
        %v1080 = vpow.pop %v1079
        %v1081 = vmul.f32 %v1018, %v1080
        %v1082 = vsel %vm1020, %v1076, 0.0
        %1083 = vadd.xlane.f32.xlu0 %v1082
        %v1084 = vpop.xlane.xlu0 %1083
        %v1085 = vadd.f32 %v1084, %v1081
        %v1086 = vpack.c.bf16 %v1076, %v1076
        %v1088 = vsel %vm1020, %v1086, 0
        %vm1090 = vcmask 1043456
        %v1092 = vsel %vm1090, %v1005, 0
        %1094 = vmatprep.subr.bf16.mxu0 0
        %1095 = vmatpush1.bf16.msra.mxu0 %v1092
        %1096 = vmatprep.subr.bf16.mxu0 0
        %1097 = vmatpush1.bf16.msra.mxu0 0
        %1098 = vmatprep.subr.bf16.mxu0 0
        %1099 = vmatpush1.bf16.msra.mxu0 0
        %1100 = vmatprep.subr.bf16.mxu0 0
        %1101 = vmatpush1.bf16.msra.mxu0 0
        %1102 = vmatprep.subr.bf16.mxu0 0
        %1103 = vmatpush1.bf16.msra.mxu0 0
        %1104 = vmatprep.subr.bf16.mxu0 0
        %1105 = vmatpush1.bf16.msra.mxu0 0
        %1106 = vmatprep.subr.bf16.mxu0 0
        %1107 = vmatpush1.bf16.msra.mxu0 0
        %1108 = vmatprep.subr.bf16.mxu0 0
        %1109 = vmatpush1.bf16.msra.mxu0 0
        %1110 = vmatprep.subr.bf16.mxu0 0
        %1111 = vmatpush1.bf16.msra.mxu0 0
        %1112 = vmatprep.subr.bf16.mxu0 0
        %1113 = vmatpush1.bf16.msra.mxu0 0
        %1114 = vmatprep.subr.bf16.mxu0 0
        %1115 = vmatpush1.bf16.msra.mxu0 0
        %1116 = vmatprep.subr.bf16.mxu0 0
        %1117 = vmatpush1.bf16.msra.mxu0 0
        %1118 = vmatprep.subr.bf16.mxu0 0
        %1119 = vmatpush1.bf16.msra.mxu0 0
        %1120 = vmatprep.subr.bf16.mxu0 0
        %1121 = vmatpush1.bf16.msra.mxu0 0
        %1122 = vmatprep.subr.bf16.mxu0 0
        %1123 = vmatpush1.bf16.msra.mxu0 0
        %1124 = vmatprep.subr.bf16.mxu0 0
        %1125 = vmatpush1.bf16.msra.mxu0 0
        %1126 = vmatprep.mubr.bf16.mxu0 0
        %1127 = vmatmul.mubr.bf16.gmra.mrb[0].mxu0 %v1088
        %v1128 = vpop.f32.mrb[0].mxu0
        %v1129 = vadd.f32 0.0, %v1128
        %v1130 = vpop.f32.mrb[0].mxu0
        %v1131 = vpop.f32.mrb[0].mxu0
        %v1132 = vpop.f32.mrb[0].mxu0
        %1133 = vdwg.mxu0
        %v1134 = vrcp.pop %v1085
        %v1135 = vmul.f32 %v1129, %v1134
        %1137 = vrot.lane.b32.xlu0 %v1003, 120
        %v1138 = vpop.permute.xlu0 %1137
        %1140 = vrot.lane.b32.xlu0 %v1004, 120
        %v1141 = vpop.permute.xlu0 %1140
        %v1143 = vsel %vm1020, %v1138, 0
        %v1146 = vsel %vm1020, %v1141, 0
        %1148 = vmatprep.subr.bf16.mxu0 0
        %1149 = vmatpush1.bf16.xpose.msra.mxu0 %v1146
        %1150 = vmatprep.subr.bf16.mxu0 0
        %1151 = vmatpush1.bf16.xpose.msra.mxu0 0
        %1152 = vmatprep.subr.bf16.mxu0 0
        %1153 = vmatpush1.bf16.xpose.msra.mxu0 0
        %1154 = vmatprep.subr.bf16.mxu0 0
        %1155 = vmatpush1.bf16.xpose.msra.mxu0 0
        %1156 = vmatprep.subr.bf16.mxu0 0
        %1157 = vmatpush1.bf16.xpose.msra.mxu0 0
        %1158 = vmatprep.subr.bf16.mxu0 0
        %1159 = vmatpush1.bf16.xpose.msra.mxu0 0
        %1160 = vmatprep.subr.bf16.mxu0 0
        %1161 = vmatpush1.bf16.xpose.msra.mxu0 0
        %1162 = vmatprep.subr.bf16.mxu0 0
        %1163 = vmatpush1.bf16.xpose.msra.mxu0 0
        %1164 = vmatprep.subr.bf16.mxu0 0
        %1165 = vmatpush1.bf16.xpose.msra.mxu0 0
        %1166 = vmatprep.subr.bf16.mxu0 0
        %1167 = vmatpush1.bf16.xpose.msra.mxu0 0
        %1168 = vmatprep.subr.bf16.mxu0 0
        %1169 = vmatpush1.bf16.xpose.msra.mxu0 0
        %1170 = vmatprep.subr.bf16.mxu0 0
        %1171 = vmatpush1.bf16.xpose.msra.mxu0 0
        %1172 = vmatprep.subr.bf16.mxu0 0
        %1173 = vmatpush1.bf16.xpose.msra.mxu0 0
        %1174 = vmatprep.subr.bf16.mxu0 0
        %1175 = vmatpush1.bf16.xpose.msra.mxu0 0
        %1176 = vmatprep.subr.bf16.mxu0 0
        %1177 = vmatpush1.bf16.xpose.msra.mxu0 0
        %1178 = vmatprep.subr.bf16.mxu0 0
        %1179 = vmatpush1.bf16.xpose.msra.mxu0 0
        %1180 = vmatprep.mubr.bf16.mxu0 0
        %1181 = vmatmul.mubr.bf16.gmra.mrb[0].mxu0 %v1143
        %v1182 = vpop.f32.mrb[0].mxu0
        %v1183 = vadd.f32 0.0, %v1182
        %v1184 = vpop.f32.mrb[0].mxu0
        %v1185 = vpop.f32.mrb[0].mxu0
        %v1186 = vpop.f32.mrb[0].mxu0
        %1187 = vdwg.mxu0
        %v1188 = vsel %vm1014, %v1183, -inf
        %v1189 = vsel %vm1020, %v1188, -inf
        %1190 = vmax.xlane.f32.xlu0 %v1189
        %v1191 = vpop.xlane.xlu0 %1190
        %v1192 = vmax.f32 %v1191, 0.0
        %v1193 = vsel %vm1019, %v1192, %v1191
        %v1194 = vsub.f32 %v1188, %v1193
        %v1195 = vmul.f32 %v1194, 1.442695
        %v1196 = vpow.pop %v1195
        %v1197 = vsel %vm1014, %v1196, 0.0
        %v1198 = vsub.f32 0.0, %v1193
        %v1199 = vmin.f32 %v1198, 0.0
        %v1200 = vmul.f32 %v1199, 1.442695
        %v1201 = vpow.pop %v1200
        %v1202 = vmul.f32 %v1018, %v1201
        %v1203 = vsel %vm1020, %v1197, 0.0
        %1204 = vadd.xlane.f32.xlu0 %v1203
        %v1205 = vpop.xlane.xlu0 %1204
        %v1206 = vadd.f32 %v1205, %v1202
        %v1207 = vpack.c.bf16 %v1197, %v1197
        %1209 = vrot.lane.b32.xlu0 %v1005, 120
        %v1210 = vpop.permute.xlu0 %1209
        %v1212 = vsel %vm1020, %v1207, 0
        %v1215 = vsel %vm1090, %v1210, 0
        %1217 = vmatprep.subr.bf16.mxu0 0
        %1218 = vmatpush1.bf16.msra.mxu0 %v1215
        %1219 = vmatprep.subr.bf16.mxu0 0
        %1220 = vmatpush1.bf16.msra.mxu0 0
        %1221 = vmatprep.subr.bf16.mxu0 0
        %1222 = vmatpush1.bf16.msra.mxu0 0
        %1223 = vmatprep.subr.bf16.mxu0 0
        %1224 = vmatpush1.bf16.msra.mxu0 0
        %1225 = vmatprep.subr.bf16.mxu0 0
        %1226 = vmatpush1.bf16.msra.mxu0 0
        %1227 = vmatprep.subr.bf16.mxu0 0
        %1228 = vmatpush1.bf16.msra.mxu0 0
        %1229 = vmatprep.subr.bf16.mxu0 0
        %1230 = vmatpush1.bf16.msra.mxu0 0
        %1231 = vmatprep.subr.bf16.mxu0 0
        %1232 = vmatpush1.bf16.msra.mxu0 0
        %1233 = vmatprep.subr.bf16.mxu0 0
        %1234 = vmatpush1.bf16.msra.mxu0 0
        %1235 = vmatprep.subr.bf16.mxu0 0
        %1236 = vmatpush1.bf16.msra.mxu0 0
        %1237 = vmatprep.subr.bf16.mxu0 0
        %1238 = vmatpush1.bf16.msra.mxu0 0
        %1239 = vmatprep.subr.bf16.mxu0 0
        %1240 = vmatpush1.bf16.msra.mxu0 0
        %1241 = vmatprep.subr.bf16.mxu0 0
        %1242 = vmatpush1.bf16.msra.mxu0 0
        %1243 = vmatprep.subr.bf16.mxu0 0
        %1244 = vmatpush1.bf16.msra.mxu0 0
        %1245 = vmatprep.subr.bf16.mxu0 0
        %1246 = vmatpush1.bf16.msra.mxu0 0
        %1247 = vmatprep.subr.bf16.mxu0 0
        %1248 = vmatpush1.bf16.msra.mxu0 0
        %1249 = vmatprep.mubr.bf16.mxu0 0
        %1250 = vmatmul.mubr.bf16.gmra.mrb[0].mxu0 %v1212
        %v1251 = vpop.f32.mrb[0].mxu0
        %v1252 = vadd.f32 0.0, %v1251
        %v1253 = vpop.f32.mrb[0].mxu0
        %v1254 = vpop.f32.mrb[0].mxu0
        %v1255 = vpop.f32.mrb[0].mxu0
        %1256 = vdwg.mxu0
        %v1257 = vrcp.pop %v1206
        %v1258 = vmul.f32 %v1252, %v1257
        %1259 = vrot.lane.b32.xlu0 %v1003, 112
        %v1260 = vpop.permute.xlu0 %1259
        %1261 = vrot.lane.b32.xlu0 %v1004, 112
        %v1262 = vpop.permute.xlu0 %1261
        %v1264 = vsel %vm1020, %v1260, 0
        %v1267 = vsel %vm1020, %v1262, 0
        %1269 = vmatprep.subr.bf16.mxu0 0
        %1270 = vmatpush1.bf16.xpose.msra.mxu0 %v1267
        %1271 = vmatprep.subr.bf16.mxu0 0
        %1272 = vmatpush1.bf16.xpose.msra.mxu0 0
        %1273 = vmatprep.subr.bf16.mxu0 0
        %1274 = vmatpush1.bf16.xpose.msra.mxu0 0
        %1275 = vmatprep.subr.bf16.mxu0 0
        %1276 = vmatpush1.bf16.xpose.msra.mxu0 0
        %1277 = vmatprep.subr.bf16.mxu0 0
        %1278 = vmatpush1.bf16.xpose.msra.mxu0 0
        %1279 = vmatprep.subr.bf16.mxu0 0
        %1280 = vmatpush1.bf16.xpose.msra.mxu0 0
        %1281 = vmatprep.subr.bf16.mxu0 0
        %1282 = vmatpush1.bf16.xpose.msra.mxu0 0
        %1283 = vmatprep.subr.bf16.mxu0 0
        %1284 = vmatpush1.bf16.xpose.msra.mxu0 0
        %1285 = vmatprep.subr.bf16.mxu0 0
        %1286 = vmatpush1.bf16.xpose.msra.mxu0 0
        %1287 = vmatprep.subr.bf16.mxu0 0
        %1288 = vmatpush1.bf16.xpose.msra.mxu0 0
        %1289 = vmatprep.subr.bf16.mxu0 0
        %1290 = vmatpush1.bf16.xpose.msra.mxu0 0
        %1291 = vmatprep.subr.bf16.mxu0 0
        %1292 = vmatpush1.bf16.xpose.msra.mxu0 0
        %1293 = vmatprep.subr.bf16.mxu0 0
        %1294 = vmatpush1.bf16.xpose.msra.mxu0 0
        %1295 = vmatprep.subr.bf16.mxu0 0
        %1296 = vmatpush1.bf16.xpose.msra.mxu0 0
        %1297 = vmatprep.subr.bf16.mxu0 0
        %1298 = vmatpush1.bf16.xpose.msra.mxu0 0
        %1299 = vmatprep.subr.bf16.mxu0 0
        %1300 = vmatpush1.bf16.xpose.msra.mxu0 0
        %1301 = vmatprep.mubr.bf16.mxu0 0
        %1302 = vmatmul.mubr.bf16.gmra.mrb[0].mxu0 %v1264
        %v1303 = vpop.f32.mrb[0].mxu0
        %v1304 = vadd.f32 0.0, %v1303
        %v1305 = vpop.f32.mrb[0].mxu0
        %v1306 = vpop.f32.mrb[0].mxu0
        %v1307 = vpop.f32.mrb[0].mxu0
        %1308 = vdwg.mxu0
        %v1309 = vsel %vm1014, %v1304, -inf
        %v1310 = vsel %vm1020, %v1309, -inf
        %1311 = vmax.xlane.f32.xlu0 %v1310
        %v1312 = vpop.xlane.xlu0 %1311
        %v1313 = vmax.f32 %v1312, 0.0
        %v1314 = vsel %vm1019, %v1313, %v1312
        %v1315 = vsub.f32 %v1309, %v1314
        %v1316 = vmul.f32 %v1315, 1.442695
        %v1317 = vpow.pop %v1316
        %v1318 = vsel %vm1014, %v1317, 0.0
        %v1319 = vsub.f32 0.0, %v1314
        %v1320 = vmin.f32 %v1319, 0.0
        %v1321 = vmul.f32 %v1320, 1.442695
        %v1322 = vpow.pop %v1321
        %v1323 = vmul.f32 %v1018, %v1322
        %v1324 = vsel %vm1020, %v1318, 0.0
        %1325 = vadd.xlane.f32.xlu0 %v1324
        %v1326 = vpop.xlane.xlu0 %1325
        %v1327 = vadd.f32 %v1326, %v1323
        %v1328 = vpack.c.bf16 %v1318, %v1318
        %1329 = vrot.lane.b32.xlu0 %v1005, 112
        %v1330 = vpop.permute.xlu0 %1329
        %v1332 = vsel %vm1020, %v1328, 0
        %v1335 = vsel %vm1090, %v1330, 0
        %1337 = vmatprep.subr.bf16.mxu0 0
        %1338 = vmatpush1.bf16.msra.mxu0 %v1335
        %1339 = vmatprep.subr.bf16.mxu0 0
        %1340 = vmatpush1.bf16.msra.mxu0 0
        %1341 = vmatprep.subr.bf16.mxu0 0
        %1342 = vmatpush1.bf16.msra.mxu0 0
        %1343 = vmatprep.subr.bf16.mxu0 0
        %1344 = vmatpush1.bf16.msra.mxu0 0
        %1345 = vmatprep.subr.bf16.mxu0 0
        %1346 = vmatpush1.bf16.msra.mxu0 0
        %1347 = vmatprep.subr.bf16.mxu0 0
        %1348 = vmatpush1.bf16.msra.mxu0 0
        %1349 = vmatprep.subr.bf16.mxu0 0
        %1350 = vmatpush1.bf16.msra.mxu0 0
        %1351 = vmatprep.subr.bf16.mxu0 0
        %1352 = vmatpush1.bf16.msra.mxu0 0
        %1353 = vmatprep.subr.bf16.mxu0 0
        %1354 = vmatpush1.bf16.msra.mxu0 0
        %1355 = vmatprep.subr.bf16.mxu0 0
        %1356 = vmatpush1.bf16.msra.mxu0 0
        %1357 = vmatprep.subr.bf16.mxu0 0
        %1358 = vmatpush1.bf16.msra.mxu0 0
        %1359 = vmatprep.subr.bf16.mxu0 0
        %1360 = vmatpush1.bf16.msra.mxu0 0
        %1361 = vmatprep.subr.bf16.mxu0 0
        %1362 = vmatpush1.bf16.msra.mxu0 0
        %1363 = vmatprep.subr.bf16.mxu0 0
        %1364 = vmatpush1.bf16.msra.mxu0 0
        %1365 = vmatprep.subr.bf16.mxu0 0
        %1366 = vmatpush1.bf16.msra.mxu0 0
        %1367 = vmatprep.subr.bf16.mxu0 0
        %1368 = vmatpush1.bf16.msra.mxu0 0
        %1369 = vmatprep.mubr.bf16.mxu0 0
        %1370 = vmatmul.mubr.bf16.gmra.mrb[0].mxu0 %v1332
        %v1371 = vpop.f32.mrb[0].mxu0
        %v1372 = vadd.f32 0.0, %v1371
        %v1373 = vpop.f32.mrb[0].mxu0
        %v1374 = vpop.f32.mrb[0].mxu0
        %v1375 = vpop.f32.mrb[0].mxu0
        %1376 = vdwg.mxu0
        %v1377 = vrcp.pop %v1327
        %v1378 = vmul.f32 %v1372, %v1377
        %1379 = vrot.lane.b32.xlu0 %v1003, 104
        %v1380 = vpop.permute.xlu0 %1379
        %1381 = vrot.lane.b32.xlu0 %v1004, 104
        %v1382 = vpop.permute.xlu0 %1381
        %v1384 = vsel %vm1020, %v1380, 0
        %v1387 = vsel %vm1020, %v1382, 0
        %1389 = vmatprep.subr.bf16.mxu0 0
        %1390 = vmatpush1.bf16.xpose.msra.mxu0 %v1387
        %1391 = vmatprep.subr.bf16.mxu0 0
        %1392 = vmatpush1.bf16.xpose.msra.mxu0 0
        %1393 = vmatprep.subr.bf16.mxu0 0
        %1394 = vmatpush1.bf16.xpose.msra.mxu0 0
        %1395 = vmatprep.subr.bf16.mxu0 0
        %1396 = vmatpush1.bf16.xpose.msra.mxu0 0
        %1397 = vmatprep.subr.bf16.mxu0 0
        %1398 = vmatpush1.bf16.xpose.msra.mxu0 0
        %1399 = vmatprep.subr.bf16.mxu0 0
        %1400 = vmatpush1.bf16.xpose.msra.mxu0 0
        %1401 = vmatprep.subr.bf16.mxu0 0
        %1402 = vmatpush1.bf16.xpose.msra.mxu0 0
        %1403 = vmatprep.subr.bf16.mxu0 0
        %1404 = vmatpush1.bf16.xpose.msra.mxu0 0
        %1405 = vmatprep.subr.bf16.mxu0 0
        %1406 = vmatpush1.bf16.xpose.msra.mxu0 0
        %1407 = vmatprep.subr.bf16.mxu0 0
        %1408 = vmatpush1.bf16.xpose.msra.mxu0 0
        %1409 = vmatprep.subr.bf16.mxu0 0
        %1410 = vmatpush1.bf16.xpose.msra.mxu0 0
        %1411 = vmatprep.subr.bf16.mxu0 0
        %1412 = vmatpush1.bf16.xpose.msra.mxu0 0
        %1413 = vmatprep.subr.bf16.mxu0 0
        %1414 = vmatpush1.bf16.xpose.msra.mxu0 0
        %1415 = vmatprep.subr.bf16.mxu0 0
        %1416 = vmatpush1.bf16.xpose.msra.mxu0 0
        %1417 = vmatprep.subr.bf16.mxu0 0
        %1418 = vmatpush1.bf16.xpose.msra.mxu0 0
        %1419 = vmatprep.subr.bf16.mxu0 0
        %1420 = vmatpush1.bf16.xpose.msra.mxu0 0
        %1421 = vmatprep.mubr.bf16.mxu0 0
        %1422 = vmatmul.mubr.bf16.gmra.mrb[0].mxu0 %v1384
        %v1423 = vpop.f32.mrb[0].mxu0
        %v1424 = vadd.f32 0.0, %v1423
        %v1425 = vpop.f32.mrb[0].mxu0
        %v1426 = vpop.f32.mrb[0].mxu0
        %v1427 = vpop.f32.mrb[0].mxu0
        %1428 = vdwg.mxu0
        %v1429 = vsel %vm1014, %v1424, -inf
        %v1430 = vsel %vm1020, %v1429, -inf
        %1431 = vmax.xlane.f32.xlu0 %v1430
        %v1432 = vpop.xlane.xlu0 %1431
        %v1433 = vmax.f32 %v1432, 0.0
        %v1434 = vsel %vm1019, %v1433, %v1432
        %v1435 = vsub.f32 %v1429, %v1434
        %v1436 = vmul.f32 %v1435, 1.442695
        %v1437 = vpow.pop %v1436
        %v1438 = vsel %vm1014, %v1437, 0.0
        %v1439 = vsub.f32 0.0, %v1434
        %v1440 = vmin.f32 %v1439, 0.0
        %v1441 = vmul.f32 %v1440, 1.442695
        %v1442 = vpow.pop %v1441
        %v1443 = vmul.f32 %v1018, %v1442
        %v1444 = vsel %vm1020, %v1438, 0.0
        %1445 = vadd.xlane.f32.xlu0 %v1444
        %v1446 = vpop.xlane.xlu0 %1445
        %v1447 = vadd.f32 %v1446, %v1443
        %v1448 = vpack.c.bf16 %v1438, %v1438
        %1449 = vrot.lane.b32.xlu0 %v1005, 104
        %v1450 = vpop.permute.xlu0 %1449
        %v1452 = vsel %vm1020, %v1448, 0
        %v1455 = vsel %vm1090, %v1450, 0
        %1457 = vmatprep.subr.bf16.mxu0 0
        %1458 = vmatpush1.bf16.msra.mxu0 %v1455
        %1459 = vmatprep.subr.bf16.mxu0 0
        %1460 = vmatpush1.bf16.msra.mxu0 0
        %1461 = vmatprep.subr.bf16.mxu0 0
        %1462 = vmatpush1.bf16.msra.mxu0 0
        %1463 = vmatprep.subr.bf16.mxu0 0
        %1464 = vmatpush1.bf16.msra.mxu0 0
        %1465 = vmatprep.subr.bf16.mxu0 0
        %1466 = vmatpush1.bf16.msra.mxu0 0
        %1467 = vmatprep.subr.bf16.mxu0 0
        %1468 = vmatpush1.bf16.msra.mxu0 0
        %1469 = vmatprep.subr.bf16.mxu0 0
        %1470 = vmatpush1.bf16.msra.mxu0 0
        %1471 = vmatprep.subr.bf16.mxu0 0
        %1472 = vmatpush1.bf16.msra.mxu0 0
        %1473 = vmatprep.subr.bf16.mxu0 0
        %1474 = vmatpush1.bf16.msra.mxu0 0
        %1475 = vmatprep.subr.bf16.mxu0 0
        %1476 = vmatpush1.bf16.msra.mxu0 0
        %1477 = vmatprep.subr.bf16.mxu0 0
        %1478 = vmatpush1.bf16.msra.mxu0 0
        %1479 = vmatprep.subr.bf16.mxu0 0
        %1480 = vmatpush1.bf16.msra.mxu0 0
        %1481 = vmatprep.subr.bf16.mxu0 0
        %1482 = vmatpush1.bf16.msra.mxu0 0
        %1483 = vmatprep.subr.bf16.mxu0 0
        %1484 = vmatpush1.bf16.msra.mxu0 0
        %1485 = vmatprep.subr.bf16.mxu0 0
        %1486 = vmatpush1.bf16.msra.mxu0 0
        %1487 = vmatprep.subr.bf16.mxu0 0
        %1488 = vmatpush1.bf16.msra.mxu0 0
        %1489 = vmatprep.mubr.bf16.mxu0 0
        %1490 = vmatmul.mubr.bf16.gmra.mrb[0].mxu0 %v1452
        %v1491 = vpop.f32.mrb[0].mxu0
        %v1492 = vadd.f32 0.0, %v1491
        %v1493 = vpop.f32.mrb[0].mxu0
        %v1494 = vpop.f32.mrb[0].mxu0
        %v1495 = vpop.f32.mrb[0].mxu0
        %1496 = vdwg.mxu0
        %v1497 = vrcp.pop %v1447
        %v1498 = vmul.f32 %v1492, %v1497
        %1500 = vrot.lane.b32.xlu0 %v1258, 8
        %v1501 = vpop.permute.xlu0 %1500
        %1504 = vrot.lane.b32.xlu0 %v1378, 16
        %v1505 = vpop.permute.xlu0 %1504
        %1508 = vrot.lane.b32.xlu0 %v1498, 24
        %v1509 = vpop.permute.xlu0 %1508
        %v1511 = vsel %vm1020, %v1135, %v1501
        %vm1512 = vcmask 130048
        %v1513 = vsel %vm1512, %v1511, %v1505
        %vm1514 = vcmask 195584
        %v1515 = vsel %vm1514, %v1513, %v1509
        %v1516 = vpack.c.bf16 %v1515, %v1515
        %v1517 = vld [vmem:[#allocation17] sm:$0xf]
        %v1518 = vld [vmem:[#allocation17 + $0x4] sm:$0xf]
        %v1519 = vld [vmem:[#allocation17 + $0x8] sm:$0xf]
        %v1520 = vld [vmem:[#allocation17 + $0xc] sm:$0xf]
        %v1521 = vld [vmem:[#allocation19] sm:$0x1]
        %v1523 = vlaneseq
        %v1524 = vshrl.u32 %v1523, 7
        %v1525 = vsub.s32 0, %v1524
        %v1526 = vrot.slane %v1521, %v1525
        %v1532 = vunpack.c.l.b16 %v1517
        %v1533 = vunpack.c.l.b16 %v1518
        %v1534 = vunpack.c.l.b16 %v1519
        %v1535 = vunpack.c.l.b16 %v1520
        %v1536 = vpack.c.b16 %v1533, %v1532
        %v1537 = vpack.c.b16 %v1535, %v1534
        %v1541 = vsel %vm780, %v1516, 0
        %1543 = vmatprep.subr.bf16.mxu0 0
        %1544 = vmatpush1.bf16.msra.mxu0 %v1536
        %1545 = vmatprep.subr.bf16.mxu0 0
        %1546 = vmatpush1.bf16.msra.mxu0 %v1537
        %1547 = vmatprep.subr.bf16.mxu0 0
        %1548 = vmatpush1.bf16.msra.mxu0 0
        %1549 = vmatprep.subr.bf16.mxu0 0
        %1550 = vmatpush1.bf16.msra.mxu0 0
        %1551 = vmatprep.subr.bf16.mxu0 0
        %1552 = vmatpush1.bf16.msra.mxu0 0
        %1553 = vmatprep.subr.bf16.mxu0 0
        %1554 = vmatpush1.bf16.msra.mxu0 0
        %1555 = vmatprep.subr.bf16.mxu0 0
        %1556 = vmatpush1.bf16.msra.mxu0 0
        %1557 = vmatprep.subr.bf16.mxu0 0
        %1558 = vmatpush1.bf16.msra.mxu0 0
        %1559 = vmatprep.subr.bf16.mxu0 0
        %1560 = vmatpush1.bf16.msra.mxu0 0
        %1561 = vmatprep.subr.bf16.mxu0 0
        %1562 = vmatpush1.bf16.msra.mxu0 0
        %1563 = vmatprep.subr.bf16.mxu0 0
        %1564 = vmatpush1.bf16.msra.mxu0 0
        %1565 = vmatprep.subr.bf16.mxu0 0
        %1566 = vmatpush1.bf16.msra.mxu0 0
        %1567 = vmatprep.subr.bf16.mxu0 0
        %1568 = vmatpush1.bf16.msra.mxu0 0
        %1569 = vmatprep.subr.bf16.mxu0 0
        %1570 = vmatpush1.bf16.msra.mxu0 0
        %1571 = vmatprep.subr.bf16.mxu0 0
        %1572 = vmatpush1.bf16.msra.mxu0 0
        %1573 = vmatprep.subr.bf16.mxu0 0
        %1574 = vmatpush1.bf16.msra.mxu0 0
        %1575 = vmatprep.mubr.bf16.mxu0 0
        %1576 = vmatmul.mubr.bf16.gmra.mrb[0].mxu0 %v1541
        %v1577 = vpop.f32.mrb[0].mxu0
        %v1578 = vadd.f32 %v1526, %v1577
        %v1579 = vpop.f32.mrb[0].mxu0
        %v1580 = vpop.f32.mrb[0].mxu0
        %v1581 = vpop.f32.mrb[0].mxu0
        %1582 = vdwg.mxu0
        %v1583 = vadd.f32 %v1578, %v777
        %v1584 = vld [vmem:[#allocation20] sm:$0x1]
        %v1585 = vld [vmem:[#allocation22] sm:$0x1]
        %v1586 = vsel %vm780, %v1583, 0.0
        %1587 = vadd.xlane.f32.xlu0 %v1586
        %v1588 = vpop.xlane.xlu0 %1587
        %v1589 = vmul.f32 %v1588, %v784
        %v1590 = vsub.f32 %v1583, %v1589
        %v1591 = vmul.f32 %v1590, %v1590
        %v1592 = vsel %vm780, %v1591, 0.0
        %1593 = vadd.xlane.f32.xlu0 %v1592
        %v1594 = vpop.xlane.xlu0 %1593
        %v1595 = vmul.f32 %v1594, %v784
        %v1596 = vadd.f32 %v1595, 1e-05
        %v1597 = vrsqrt.pop %v1596
        %v1598 = vmul.f32 %v1590, %v1597
        %v1600 = vlaneseq
        %v1601 = vshrl.u32 %v1600, 7
        %v1602 = vsub.s32 0, %v1601
        %v1603 = vrot.slane %v1584, %v1602
        %v1605 = vmul.f32 %v1598, %v1603
        %v1607 = vlaneseq
        %v1608 = vshrl.u32 %v1607, 7
        %v1609 = vsub.s32 0, %v1608
        %v1610 = vrot.slane %v1585, %v1609
        %v1612 = vadd.f32 %v1605, %v1610
        %v1613 = vpack.c.bf16 %v1612, %v1612
        %v1614 = vld [vmem:[#allocation23] sm:$0xf]
        %v1615 = vld [vmem:[#allocation23 + $0x4] sm:$0xf]
        %v1616 = vld [vmem:[#allocation23 + $0x8] sm:$0xf]
        %v1617 = vld [vmem:[#allocation23 + $0xc] sm:$0xf]
        %v1618 = vld [vmem:[#allocation25] sm:$0x1]
        %v1620 = vlaneseq
        %v1621 = vshrl.u32 %v1620, 7
        %v1622 = vsub.s32 0, %v1621
        %v1623 = vrot.slane %v1618, %v1622
        %v1629 = vunpack.c.l.b16 %v1614
        %v1630 = vunpack.c.l.b16 %v1615
        %v1631 = vunpack.c.l.b16 %v1616
        %v1632 = vunpack.c.l.b16 %v1617
        %v1633 = vpack.c.b16 %v1630, %v1629
        %v1634 = vpack.c.b16 %v1632, %v1631
        %v1638 = vsel %vm780, %v1613, 0
        %1640 = vmatprep.subr.bf16.mxu0 0
        %1641 = vmatpush1.bf16.msra.mxu0 %v1633
        %1642 = vmatprep.subr.bf16.mxu0 0
        %1643 = vmatpush1.bf16.msra.mxu0 %v1634
        %1644 = vmatprep.subr.bf16.mxu0 0
        %1645 = vmatpush1.bf16.msra.mxu0 0
        %1646 = vmatprep.subr.bf16.mxu0 0
        %1647 = vmatpush1.bf16.msra.mxu0 0
        %1648 = vmatprep.subr.bf16.mxu0 0
        %1649 = vmatpush1.bf16.msra.mxu0 0
        %1650 = vmatprep.subr.bf16.mxu0 0
        %1651 = vmatpush1.bf16.msra.mxu0 0
        %1652 = vmatprep.subr.bf16.mxu0 0
        %1653 = vmatpush1.bf16.msra.mxu0 0
        %1654 = vmatprep.subr.bf16.mxu0 0
        %1655 = vmatpush1.bf16.msra.mxu0 0
        %1656 = vmatprep.subr.bf16.mxu0 0
        %1657 = vmatpush1.bf16.msra.mxu0 0
        %1658 = vmatprep.subr.bf16.mxu0 0
        %1659 = vmatpush1.bf16.msra.mxu0 0
        %1660 = vmatprep.subr.bf16.mxu0 0
        %1661 = vmatpush1.bf16.msra.mxu0 0
        %1662 = vmatprep.subr.bf16.mxu0 0
        %1663 = vmatpush1.bf16.msra.mxu0 0
        %1664 = vmatprep.subr.bf16.mxu0 0
        %1665 = vmatpush1.bf16.msra.mxu0 0
        %1666 = vmatprep.subr.bf16.mxu0 0
        %1667 = vmatpush1.bf16.msra.mxu0 0
        %1668 = vmatprep.subr.bf16.mxu0 0
        %1669 = vmatpush1.bf16.msra.mxu0 0
        %1670 = vmatprep.subr.bf16.mxu0 0
        %1671 = vmatpush1.bf16.msra.mxu0 0
        %1672 = vmatprep.mubr.bf16.mxu0 0
        %1673 = vmatmul.mubr.bf16.gmra.mrb[0].mxu0 %v1638
        %v1674 = vpop.f32.mrb[0].mxu0
        %v1675 = vadd.f32 %v1623, %v1674
        %v1676 = vpop.f32.mrb[0].mxu0
        %v1677 = vpop.f32.mrb[0].mxu0
        %v1678 = vpop.f32.mrb[0].mxu0
        %1679 = vdwg.mxu0
        %v1680 = vmax.f32 %v1675, 0.0
        %v1681 = vpack.c.bf16 %v1680, %v1680
        %v1682 = vld [vmem:[#allocation26] sm:$0xf]
        %v1683 = vld [vmem:[#allocation26 + $0x4] sm:$0xf]
        %v1684 = vld [vmem:[#allocation26 + $0x8] sm:$0xf]
        %v1685 = vld [vmem:[#allocation26 + $0xc] sm:$0xf]
        %v1686 = vld [vmem:[#allocation26 + $0x10] sm:$0xf]
        %v1687 = vld [vmem:[#allocation26 + $0x14] sm:$0xf]
        %v1688 = vld [vmem:[#allocation26 + $0x18] sm:$0xf]
        %v1689 = vld [vmem:[#allocation26 + $0x1c] sm:$0xf]
        %v1690 = vld [vmem:[#allocation26 + $0x20] sm:$0xf]
        %v1691 = vld [vmem:[#allocation26 + $0x24] sm:$0xf]
        %v1692 = vld [vmem:[#allocation26 + $0x28] sm:$0xf]
        %v1693 = vld [vmem:[#allocation26 + $0x2c] sm:$0xf]
        %v1694 = vld [vmem:[#allocation26 + $0x30] sm:$0xf]
        %v1695 = vld [vmem:[#allocation26 + $0x34] sm:$0xf]
        %v1696 = vld [vmem:[#allocation26 + $0x38] sm:$0xf]
        %v1697 = vld [vmem:[#allocation26 + $0x3c] sm:$0xf]
        %v1698 = vld [vmem:[#allocation28] sm:$0x1]
        %v1700 = vlaneseq
        %v1701 = vshrl.u32 %v1700, 7
        %v1702 = vsub.s32 0, %v1701
        %v1703 = vrot.slane %v1698, %v1702
        %v1721 = vunpack.c.l.b16 %v1682
        %v1722 = vunpack.c.l.b16 %v1683
        %v1723 = vunpack.c.l.b16 %v1684
        %v1724 = vunpack.c.l.b16 %v1685
        %v1725 = vunpack.c.l.b16 %v1686
        %v1726 = vunpack.c.l.b16 %v1687
        %v1727 = vunpack.c.l.b16 %v1688
        %v1728 = vunpack.c.l.b16 %v1689
        %v1729 = vunpack.c.l.b16 %v1690
        %v1730 = vunpack.c.l.b16 %v1691
        %v1731 = vunpack.c.l.b16 %v1692
        %v1732 = vunpack.c.l.b16 %v1693
        %v1733 = vunpack.c.l.b16 %v1694
        %v1734 = vunpack.c.l.b16 %v1695
        %v1735 = vunpack.c.l.b16 %v1696
        %v1736 = vunpack.c.l.b16 %v1697
        %v1737 = vpack.c.b16 %v1722, %v1721
        %v1738 = vpack.c.b16 %v1724, %v1723
        %v1739 = vpack.c.b16 %v1726, %v1725
        %v1740 = vpack.c.b16 %v1728, %v1727
        %v1741 = vpack.c.b16 %v1730, %v1729
        %v1742 = vpack.c.b16 %v1732, %v1731
        %v1743 = vpack.c.b16 %v1734, %v1733
        %v1744 = vpack.c.b16 %v1736, %v1735
        %1753 = vmatprep.subr.bf16.mxu0 0
        %1754 = vmatpush1.bf16.msra.mxu0 %v1737
        %1755 = vmatprep.subr.bf16.mxu0 0
        %1756 = vmatpush1.bf16.msra.mxu0 %v1738
        %1757 = vmatprep.subr.bf16.mxu0 0
        %1758 = vmatpush1.bf16.msra.mxu0 %v1739
        %1759 = vmatprep.subr.bf16.mxu0 0
        %1760 = vmatpush1.bf16.msra.mxu0 %v1740
        %1761 = vmatprep.subr.bf16.mxu0 0
        %1762 = vmatpush1.bf16.msra.mxu0 %v1741
        %1763 = vmatprep.subr.bf16.mxu0 0
        %1764 = vmatpush1.bf16.msra.mxu0 %v1742
        %1765 = vmatprep.subr.bf16.mxu0 0
        %1766 = vmatpush1.bf16.msra.mxu0 %v1743
        %1767 = vmatprep.subr.bf16.mxu0 0
        %1768 = vmatpush1.bf16.msra.mxu0 %v1744
        %1769 = vmatprep.subr.bf16.mxu0 0
        %1770 = vmatpush1.bf16.msra.mxu0 0
        %1771 = vmatprep.subr.bf16.mxu0 0
        %1772 = vmatpush1.bf16.msra.mxu0 0
        %1773 = vmatprep.subr.bf16.mxu0 0
        %1774 = vmatpush1.bf16.msra.mxu0 0
        %1775 = vmatprep.subr.bf16.mxu0 0
        %1776 = vmatpush1.bf16.msra.mxu0 0
        %1777 = vmatprep.subr.bf16.mxu0 0
        %1778 = vmatpush1.bf16.msra.mxu0 0
        %1779 = vmatprep.subr.bf16.mxu0 0
        %1780 = vmatpush1.bf16.msra.mxu0 0
        %1781 = vmatprep.subr.bf16.mxu0 0
        %1782 = vmatpush1.bf16.msra.mxu0 0
        %1783 = vmatprep.subr.bf16.mxu0 0
        %1784 = vmatpush1.bf16.msra.mxu0 0
        %1785 = vmatprep.mubr.bf16.mxu0 0
        %1786 = vmatmul.mubr.bf16.gmra.mrb[0].mxu0 %v1681
        %v1787 = vpop.f32.mrb[0].mxu0
        %v1788 = vadd.f32 %v1703, %v1787
        %v1789 = vpop.f32.mrb[0].mxu0
        %v1790 = vpop.f32.mrb[0].mxu0
        %v1791 = vpop.f32.mrb[0].mxu0
        %1792 = vdwg.mxu0
        %v1793 = vadd.f32 %v1788, %v1583
        %1794 = vst.msk [vmem:[%s775] sm:$0xff] %vm780, %v1793
        %s1795 = sand.u32 %s412, 1
        %s1796 = scalar_lea.sflag [#allocation4], %s1795
        %s1797 = sand.u32 %s412, 1
        %s1798 = smul.addr %s1797, 8
        %s1799 = scalar_lea.vmem [#allocation29], %s1798
        // Predicated region
        $region157: #{tpu_custom_call.1} parent=87 // pred_check
          %p1800 = pneg %p422
        $region158: #{tpu_custom_call.1} parent=87 // pred_check_branch
          %1802 = sbr.rel (%p1800) target = $region160
        $region159: #{tpu_custom_call.1} parent=87 // pred_region
          %s1804 = ssub.s32 128, 128
          %1805 = vsyncadd %s1796, %s1804
          %s1806 = smul.addr %s42, 128
          %s1807 = scalar_lea.hbm %s17, %s1806
          %s1809 = sshll.u32 %s1799, 4
          %s1810 = int_to_ptr.vmem [resolvable:$true] %s1809
          %1812 = dma.vmem_to_hbm [thread:$0]  %s1810, 128, %s1807, %s1796
        $region160: #{tpu_custom_call.1} parent=87 // pred_fallthru
          _
      $region88: #{tpu_custom_call.1} parent=5 // pred_fallthru
        _
      %p1813 = scmp.le.s32.totalorder 2, %s37
      // Predicated region
      $region161: #{tpu_custom_call.1} parent=5 // pred_check
        %p1814 = pneg %p1813
      $region162: #{tpu_custom_call.1} parent=5 // pred_check_branch
        %1816 = sbr.rel (%p1814) target = $region164
      $region163: #{tpu_custom_call.1} parent=5 // pred_region
        %s1817 = ssub.s32 %s37, 2
        // Predicated region
        $region165: #{tpu_custom_call.1} parent=163 // pred_check
          %p1818 = pneg %p428
        $region166: #{tpu_custom_call.1} parent=163 // pred_check_branch
          %1820 = sbr.rel (%p1818) target = $region168
        $region167: #{tpu_custom_call.1} parent=163 // pred_region
          %s1821 = sand.u32 %s413, 1
          %s1822 = scalar_lea.sflag [#allocation4], %s1821
          %s1823 = sand.u32 %s413, 1
          %s1824 = smul.addr %s1823, 8
          %s1825 = scalar_lea.vmem [#allocation29], %s1824
          %1826 = dma.done %s1822, 128
        $region168: #{tpu_custom_call.1} parent=163 // pred_fallthru
          _
      $region164: #{tpu_custom_call.1} parent=5 // pred_fallthru
        _
    $region6: #{tpu_custom_call.1} parent=1 // loop_footer
      %s41 = sadd.s32 1, %s37
    $region7: #{tpu_custom_call.1} parent=1 // loop_footer_branch
      %36 = sbr.rel target = $region3
    $region8: #{tpu_custom_call.1} parent=1 // loop_exit
      _
    %1827 = vsyncpa [#allocation3], 1
    %s1828 = scalar_lea.sflag [#allocation3], 1
    %1829 = vsyncpa %s1828, 1
    %1830 = vsyncpa [#allocation6], 1
    %1831 = vsyncpa [#allocation9], 1
    %1832 = vsyncpa [#allocation12], 1
    %1833 = vsyncpa [#allocation15], 1
    %1834 = vsyncpa [#allocation18], 1
    %1835 = vsyncpa [#allocation21], 1
    %1836 = vsyncpa [#allocation24], 1
    %1837 = vsyncpa [#allocation27], 1
    %1838 = vsyncpa [#allocation4], 1
    %s1839 = scalar_lea.sflag [#allocation4], 1
    %1840 = vsyncpa %s1839, 1

</llo_original>
